<compile_context>
chip_gen: v6e
topology: v6e:2x2x1
jax: 0.10.0
libtpu: 0.0.40
codegen_flags: <defaults>
</compile_context>

<pallas_src>
import functools

import jax
import jax.numpy as jnp
from jax.experimental import pallas as pl
from jax.experimental.pallas import tpu as pltpu


def _conv_bn_act_kernel(x_ref, w_ref, b_ref, o_ref, patch_ref, *,
                        kh_size, kw_size, stride, ho_t, wo, activation):
    # x_ref:     (1, Cin, Hp, Wp_pad)   padded input (bf16), whole image per n
    # w_ref:     (Cout, KH*KW*Cin)      BN-scale-folded, im2col'd weight (bf16)
    # b_ref:     (Cout, 1)              folded BN bias (f32)
    # o_ref:     (1, Cout, ho_t*Wo)     lane-dense output row tile
    # patch_ref: (KH*KW*Cin, ho_t*Wo)   persistent VMEM im2col scratch (bf16)
    cin = x_ref.shape[1]
    row_span = (ho_t - 1) * stride + kh_size           # output-row tile + halo
    rows_per_tile = ho_t * stride                      # multiple of 8 when possible
    row_start = pl.multiple_of(pl.program_id(1) * rows_per_tile, rows_per_tile)

    # Only the input rows this output-row tile needs (incl. KH-1 halo rows).
    xr = x_ref[0, :, pl.ds(row_start, row_span), :]    # (Cin, row_span, Wp_pad)

    # im2col: write every (kh, kw) tap straight into the scratch patch buffer
    # so the whole conv is one MXU matmul of contraction depth KH*KW*Cin and
    # no concatenated second copy of the patch is ever materialized.
    for kh in range(kh_size):
        for kw in range(kw_size):
            if stride == 1:
                win = xr[:, kh:kh + ho_t, kw:kw + wo]          # (Cin, ho_t, Wo)
            else:
                # TODO(synk): stride>1 uses a lane-strided slice; a wrapper-side
                # space-to-depth rearrangement would avoid it (untested path).
                win = xr[:, kh:kh + stride * (ho_t - 1) + 1:stride,
                         kw:kw + stride * (wo - 1) + 1:stride]
            tap = kh * kw_size + kw
            # Static, contiguous store into the scratch (sublane-masked only
            # when Cin is not a multiple of 8, i.e. the network stem).
            patch_ref[tap * cin:(tap + 1) * cin, :] = (
                win.reshape(cin, ho_t * wo).astype(patch_ref.dtype))
            # TODO(synk): for stride==1 the kw lane offset could instead be an
            # XLU pltpu.roll on a lane-aligned load; kept as a slice for safety.

    # bf16 x bf16 -> f32 accumulation on the MXU.  Result is already in the
    # (channels, spatial) orientation of NCHW, so no output transpose anywhere.
    acc = jnp.dot(w_ref[...], patch_ref[...], preferred_element_type=jnp.float32)
    y = acc + b_ref[...]                               # folded BN bias

    if activation == "relu":
        y = jnp.maximum(y, 0.0)
    elif activation == "relu6":
        y = jnp.clip(y, 0.0, 6.0)
    # activation == "none": identity

    o_ref[0] = y.astype(o_ref.dtype)


def _vmem_capacity_bytes():
    cap = 128 * 1024 * 1024
    try:
        cap = int(pltpu.get_tpu_info().vmem_capacity_bytes)
    except Exception:
        pass
    return cap


def _pick_row_tile(ho, wo, stride, target_lanes):
    """Output-row tile: (t*Wo) lane-dense (%128), prefer 8-aligned row starts."""
    cands = [t for t in range(1, ho + 1)
             if ho % t == 0 and (t * wo) % 128 == 0]
    if not cands:
        return ho                      # full extent is always a legal block
    aligned = [t for t in cands if (t * stride) % 8 == 0]
    pool = aligned if aligned else cands
    for t in pool:
        if t * wo >= target_lanes:     # smallest tile meeting the lane target
            return t
    return pool[-1]


def conv_bn_act(x_nchw, weight, gamma, beta, running_mean, running_var,
                *, stride=1, activation="relu", eps=1e-5,
                out_dtype=jnp.bfloat16):
    """Forward of Conv(in, out, k, stride, activation) in eval mode.

    x_nchw: (N, Cin, H, W)   weight: (Cout, Cin, KH, KW)   returns (N, Cout, Ho, Wo)
    """
    N, Cin, H, W = x_nchw.shape
    Cout, wcin, KH, KW = weight.shape
    assert wcin == Cin
    # PyTorch uses padding = kernel_size // 2 on both dims; only square odd
    # kernels reproduce "same"-style behavior, so assert that assumption.
    assert KH == KW and KH % 2 == 1, "square odd kernel sizes only"
    if activation not in ("relu", "relu6", "none"):
        raise ValueError("Unknown type %s" % activation)

    pad = KH // 2
    Ho = (H + 2 * pad - KH) // stride + 1
    Wo = (W + 2 * pad - KW) // stride + 1
    Hp, Wp = H + 2 * pad, W + 2 * pad
    Wp_pad = ((Wp + 127) // 128) * 128           # lane-align padded input rows

    vmem_cap = _vmem_capacity_bytes()
    small_vmem = vmem_cap <= 64 * 1024 * 1024    # v7x-class TensorCore
    target_lanes = 512 if small_vmem else 1024
    vmem_limit = (40 if small_vmem else 96) * 1024 * 1024

    ho_t = _pick_row_tile(Ho, Wo, stride, target_lanes)
    n_row_tiles = Ho // ho_t

    # ---- wrapper prep (plain JAX, no transposes of x or the output) ----
    x = x_nchw.astype(jnp.bfloat16)              # MXU-native, halves HBM traffic
    x = jnp.pad(x, ((0, 0), (0, 0), (pad, pad), (pad, pad + (Wp_pad - Wp))))
    # TODO(synk): jnp.pad still materializes one padded copy of x; for very
    # large activations fold the halo handling into the kernel (masked taps).

    scale = gamma / jnp.sqrt(running_var + eps)
    bias = (beta - running_mean * scale).astype(jnp.float32).reshape(Cout, 1)
    # Fold BN scale into the weight and pre-im2col it to (Cout, KH*KW*Cin),
    # column order (kh, kw, ci) to match the kernel's patch construction.
    w2 = jnp.transpose(weight, (0, 2, 3, 1)).reshape(Cout, KH * KW * Cin)
    w2 = (w2 * scale[:, None]).astype(jnp.bfloat16)

    kernel = functools.partial(
        _conv_bn_act_kernel, kh_size=KH, kw_size=KW, stride=stride,
        ho_t=ho_t, wo=Wo, activation=activation)

    out_flat = pl.pallas_call(
        kernel,
        out_shape=jax.ShapeDtypeStruct((N, Cout, Ho * Wo), out_dtype),
        grid_spec=pltpu.PrefetchScalarGridSpec(
            num_scalar_prefetch=0,
            grid=(N, n_row_tiles),
            in_specs=[
                # Whole padded image per batch element; block index constant
                # across the row-tile axis so it is DMA'd once per n.
                # TODO(synk): for huge spatial extents on v7x (64 MiB VMEM),
                # switch to halo'd input row tiles via manual DMA.
                pl.BlockSpec((1, Cin, Hp, Wp_pad), lambda n, r: (n, 0, 0, 0)),
                # TODO(synk): pipeline_mode=pl.Buffered(1) would drop the
                # redundant second buffer of these constant-index blocks.
                pl.BlockSpec((Cout, KH * KW * Cin), lambda n, r: (0, 0)),
                pl.BlockSpec((Cout, 1), lambda n, r: (0, 0)),
            ],
            out_specs=pl.BlockSpec((1, Cout, ho_t * Wo),
                                   lambda n, r: (n, 0, r)),
            scratch_shapes=[pltpu.VMEM((KH * KW * Cin, ho_t * Wo),
                                       jnp.bfloat16)],
        ),
        compiler_params=pltpu.CompilerParams(
            # Split the batch axis across TensorCores so each image is loaded
            # by exactly one core; row tiles stay a sequential in-core loop.
            dimension_semantics=("parallel", "arbitrary"),
            vmem_limit_bytes=vmem_limit),
    )(x, w2, bias)

    # (N, Cout, Ho*Wo) -> (N, Cout, Ho, Wo): free reshape, already NCHW.
    return out_flat.reshape(N, Cout, Ho, Wo)


def _reference(x, weight, gamma, beta, mean, var, *, stride, activation, eps=1e-5):
    # Mirrors the kernel's bf16 operand quantization so the comparison only
    # sees accumulation-order/output-cast differences; semantics = Conv2d +
    # eval-mode BN + activation.
    pad = weight.shape[2] // 2
    scale = gamma / jnp.sqrt(var + eps)
    bias = beta - mean * scale
    xq = x.astype(jnp.bfloat16).astype(jnp.float32)
    wq = (weight * scale[:, None, None, None]).astype(jnp.bfloat16).astype(jnp.float32)
    y = jax.lax.conv_general_dilated(
        xq, wq, window_strides=(stride, stride),
        padding=((pad, pad), (pad, pad)),
        dimension_numbers=("NCHW", "OIHW", "NCHW"))
    y = y + bias.reshape(1, -1, 1, 1)
    if activation == "relu":
        y = jnp.maximum(y, 0.0)
    elif activation == "relu6":
        y = jnp.clip(y, 0.0, 6.0)
    return y


if __name__ == "__main__":
    # Conv(in_channels=4, out_channels=8, kernel_size=3, stride=1, activation='relu')
    N, Cin, H, W = 2, 4, 16, 16
    Cout, K, STRIDE = 8, 3, 1

    key = jax.random.PRNGKey(0)
    kx, kw, kg, kb, km, kv = jax.random.split(key, 6)

    x = jax.random.normal(kx, (N, Cin, H, W), jnp.float32)
    weight = jax.random.normal(kw, (Cout, Cin, K, K), jnp.float32) * 0.1
    gamma = jax.random.normal(kg, (Cout,), jnp.float32) * 0.1 + 1.0
    beta = jax.random.normal(kb, (Cout,), jnp.float32) * 0.1
    running_mean = jax.random.normal(km, (Cout,), jnp.float32) * 0.1
    running_var = jax.random.uniform(kv, (Cout,), jnp.float32, 0.5, 1.5)
    # TODO(synk): PyTorch BatchNorm2d in training mode uses per-batch statistics;
    # this implements standard inference-mode BN with running stats.

    out = conv_bn_act(x, weight, gamma, beta, running_mean, running_var,
                      stride=STRIDE, activation="relu")
    out = jax.block_until_ready(out)

    ref = _reference(x, weight, gamma, beta, running_mean, running_var,
                     stride=STRIDE, activation="relu")
    assert out.shape == (N, Cout, H, W)
    out_f32 = out.astype(jnp.float32)
    max_err = float(jnp.max(jnp.abs(out_f32 - ref)))
    assert jnp.allclose(out_f32, ref, atol=2e-2, rtol=2e-2), max_err

    print("KERNEL_OK")
</pallas_src>

<mosaic_0001>
module attributes {stable_mosaic.version = 11 : i64} {
  func.func @_conv_bn_act_kernel(%arg0: i32, %arg1: i32, %arg2: memref<1x4x18x128xbf16, #tpu.memory_space<vmem>>, %arg3: memref<8x36xbf16, #tpu.memory_space<vmem>>, %arg4: memref<8x1xf32, #tpu.memory_space<vmem>>, %arg5: memref<1x8x256xbf16, #tpu.memory_space<vmem>>, %arg6: memref<36x256xbf16, #tpu.memory_space<vmem>>) attributes {dimension_semantics = [#tpu.dimension_semantics<parallel>, #tpu.dimension_semantics<arbitrary>], iteration_bounds = array<i64: 2, 1>, scalar_prefetch = 0 : i64, scratch_operands = 1 : i64, tpu.core_type = #tpu.core_type<tc>, window_params = [{transform_indices = @transform_0, window_bounds = array<i64: 1, 4, 18, 128>}, {pipeline_mode = #tpu.pipeline_mode<synchronous>, transform_indices = @transform_1, window_bounds = array<i64: 8, 36>}, {pipeline_mode = #tpu.pipeline_mode<synchronous>, transform_indices = @transform_2, window_bounds = array<i64: 8, 1>}, {transform_indices = @transform_3, window_bounds = array<i64: 1, 8, 256>}]} {
    %c16_i32 = arith.constant 16 : i32
    %0 = arith.muli %arg1, %c16_i32 : i32
    %1 = tpu.assume_multiple %0, 16 : i32
    %c0 = arith.constant 0 : index
    %c0_0 = arith.constant 0 : index
    %2 = arith.index_cast %1 : i32 to index
    %c0_1 = arith.constant 0 : index
    %3 = vector.load %arg2[%c0, %c0_0, %2, %c0_1] : memref<1x4x18x128xbf16, #tpu.memory_space<vmem>>, vector<1x4x18x128xbf16>
    %4 = vector.shape_cast %3 : vector<1x4x18x128xbf16> to vector<4x18x128xbf16>
    %5 = vector.extract_strided_slice %4 {offsets = [0, 0, 0], sizes = [4, 16, 16], strides = [1, 1, 1]} : vector<4x18x128xbf16> to vector<4x16x16xbf16>
    %6 = vector.shape_cast %5 : vector<4x16x16xbf16> to vector<4x256xbf16>
    %c0_2 = arith.constant 0 : index
    %c0_3 = arith.constant 0 : index
    %7 = vector.load %arg6[%c0_2, %c0_3] : memref<36x256xbf16, #tpu.memory_space<vmem>>, vector<4x256xbf16>
    tpu.vector_store %arg6[%c0_2, %c0_3], %6 {strides = array<i32>} : memref<36x256xbf16, #tpu.memory_space<vmem>>, vector<4x256xbf16>,
    %8 = vector.extract_strided_slice %4 {offsets = [0, 0, 1], sizes = [4, 16, 16], strides = [1, 1, 1]} : vector<4x18x128xbf16> to vector<4x16x16xbf16>
    %9 = vector.shape_cast %8 : vector<4x16x16xbf16> to vector<4x256xbf16>
    %c4 = arith.constant 4 : index
    %c0_4 = arith.constant 0 : index
    %10 = vector.load %arg6[%c4, %c0_4] : memref<36x256xbf16, #tpu.memory_space<vmem>>, vector<4x256xbf16>
    tpu.vector_store %arg6[%c4, %c0_4], %9 {strides = array<i32>} : memref<36x256xbf16, #tpu.memory_space<vmem>>, vector<4x256xbf16>,
    %11 = vector.extract_strided_slice %4 {offsets = [0, 0, 2], sizes = [4, 16, 16], strides = [1, 1, 1]} : vector<4x18x128xbf16> to vector<4x16x16xbf16>
    %12 = vector.shape_cast %11 : vector<4x16x16xbf16> to vector<4x256xbf16>
    %c8 = arith.constant 8 : index
    %c0_5 = arith.constant 0 : index
    %13 = vector.load %arg6[%c8, %c0_5] : memref<36x256xbf16, #tpu.memory_space<vmem>>, vector<4x256xbf16>
    tpu.vector_store %arg6[%c8, %c0_5], %12 {strides = array<i32>} : memref<36x256xbf16, #tpu.memory_space<vmem>>, vector<4x256xbf16>,
    %14 = vector.extract_strided_slice %4 {offsets = [0, 1, 0], sizes = [4, 16, 16], strides = [1, 1, 1]} : vector<4x18x128xbf16> to vector<4x16x16xbf16>
    %15 = vector.shape_cast %14 : vector<4x16x16xbf16> to vector<4x256xbf16>
    %c12 = arith.constant 12 : index
    %c0_6 = arith.constant 0 : index
    %16 = vector.load %arg6[%c12, %c0_6] : memref<36x256xbf16, #tpu.memory_space<vmem>>, vector<4x256xbf16>
    tpu.vector_store %arg6[%c12, %c0_6], %15 {strides = array<i32>} : memref<36x256xbf16, #tpu.memory_space<vmem>>, vector<4x256xbf16>,
    %17 = vector.extract_strided_slice %4 {offsets = [0, 1, 1], sizes = [4, 16, 16], strides = [1, 1, 1]} : vector<4x18x128xbf16> to vector<4x16x16xbf16>
    %18 = vector.shape_cast %17 : vector<4x16x16xbf16> to vector<4x256xbf16>
    %c16 = arith.constant 16 : index
    %c0_7 = arith.constant 0 : index
    %19 = vector.load %arg6[%c16, %c0_7] : memref<36x256xbf16, #tpu.memory_space<vmem>>, vector<4x256xbf16>
    tpu.vector_store %arg6[%c16, %c0_7], %18 {strides = array<i32>} : memref<36x256xbf16, #tpu.memory_space<vmem>>, vector<4x256xbf16>,
    %20 = vector.extract_strided_slice %4 {offsets = [0, 1, 2], sizes = [4, 16, 16], strides = [1, 1, 1]} : vector<4x18x128xbf16> to vector<4x16x16xbf16>
    %21 = vector.shape_cast %20 : vector<4x16x16xbf16> to vector<4x256xbf16>
    %c20 = arith.constant 20 : index
    %c0_8 = arith.constant 0 : index
    %22 = vector.load %arg6[%c20, %c0_8] : memref<36x256xbf16, #tpu.memory_space<vmem>>, vector<4x256xbf16>
    tpu.vector_store %arg6[%c20, %c0_8], %21 {strides = array<i32>} : memref<36x256xbf16, #tpu.memory_space<vmem>>, vector<4x256xbf16>,
    %23 = vector.extract_strided_slice %4 {offsets = [0, 2, 0], sizes = [4, 16, 16], strides = [1, 1, 1]} : vector<4x18x128xbf16> to vector<4x16x16xbf16>
    %24 = vector.shape_cast %23 : vector<4x16x16xbf16> to vector<4x256xbf16>
    %c24 = arith.constant 24 : index
    %c0_9 = arith.constant 0 : index
    %25 = vector.load %arg6[%c24, %c0_9] : memref<36x256xbf16, #tpu.memory_space<vmem>>, vector<4x256xbf16>
    tpu.vector_store %arg6[%c24, %c0_9], %24 {strides = array<i32>} : memref<36x256xbf16, #tpu.memory_space<vmem>>, vector<4x256xbf16>,
    %26 = vector.extract_strided_slice %4 {offsets = [0, 2, 1], sizes = [4, 16, 16], strides = [1, 1, 1]} : vector<4x18x128xbf16> to vector<4x16x16xbf16>
    %27 = vector.shape_cast %26 : vector<4x16x16xbf16> to vector<4x256xbf16>
    %c28 = arith.constant 28 : index
    %c0_10 = arith.constant 0 : index
    %28 = vector.load %arg6[%c28, %c0_10] : memref<36x256xbf16, #tpu.memory_space<vmem>>, vector<4x256xbf16>
    tpu.vector_store %arg6[%c28, %c0_10], %27 {strides = array<i32>} : memref<36x256xbf16, #tpu.memory_space<vmem>>, vector<4x256xbf16>,
    %29 = vector.extract_strided_slice %4 {offsets = [0, 2, 2], sizes = [4, 16, 16], strides = [1, 1, 1]} : vector<4x18x128xbf16> to vector<4x16x16xbf16>
    %30 = vector.shape_cast %29 : vector<4x16x16xbf16> to vector<4x256xbf16>
    %c32 = arith.constant 32 : index
    %c0_11 = arith.constant 0 : index
    %31 = vector.load %arg6[%c32, %c0_11] : memref<36x256xbf16, #tpu.memory_space<vmem>>, vector<4x256xbf16>
    tpu.vector_store %arg6[%c32, %c0_11], %30 {strides = array<i32>} : memref<36x256xbf16, #tpu.memory_space<vmem>>, vector<4x256xbf16>,
    %c0_12 = arith.constant 0 : index
    %c0_13 = arith.constant 0 : index
    %32 = vector.load %arg3[%c0_12, %c0_13] : memref<8x36xbf16, #tpu.memory_space<vmem>>, vector<8x36xbf16>
    %c0_14 = arith.constant 0 : index
    %c0_15 = arith.constant 0 : index
    %33 = vector.load %arg6[%c0_14, %c0_15] : memref<36x256xbf16, #tpu.memory_space<vmem>>, vector<36x256xbf16>
    %cst = arith.constant dense<0.000000e+00> : vector<8x256xf32>
    %34 = tpu.matmul %32, %33, %cst {dimension_numbers = #tpu.dot_dimension_numbers<[1], [0], [0], [1], [0, 0, 1, 1], [], []>} : vector<8x36xbf16>, vector<36x256xbf16>, vector<8x256xf32> -> vector<8x256xf32>
    %c0_16 = arith.constant 0 : index
    %c0_17 = arith.constant 0 : index
    %35 = vector.load %arg4[%c0_16, %c0_17] : memref<8x1xf32, #tpu.memory_space<vmem>>, vector<8x1xf32>
    %36 = vector.broadcast %35 : vector<8x1xf32> to vector<8x256xf32>
    %37 = arith.addf %34, %36 : vector<8x256xf32>
    %cst_18 = arith.constant 0.000000e+00 : f32
    %38 = vector.broadcast %cst_18 : f32 to vector<8x256xf32>
    %39 = arith.maximumf %37, %38 : vector<8x256xf32>
    %40 = arith.truncf %39 : vector<8x256xf32> to vector<8x256xbf16>
    %c0_19 = arith.constant 0 : index
    %c0_20 = arith.constant 0 : index
    %c0_21 = arith.constant 0 : index
    %41 = vector.load %arg5[%c0_19, %c0_20, %c0_21] : memref<1x8x256xbf16, #tpu.memory_space<vmem>>, vector<1x8x256xbf16>
    %42 = vector.shape_cast %41 : vector<1x8x256xbf16> to vector<8x256xbf16>
    %43 = vector.shape_cast %40 : vector<8x256xbf16> to vector<1x8x256xbf16>
    tpu.vector_store %arg5[%c0_19, %c0_20, %c0_21], %43 {strides = array<i32>} : memref<1x8x256xbf16, #tpu.memory_space<vmem>>, vector<1x8x256xbf16>,
    return
  }
  func.func @transform_0(%arg0: i32, %arg1: i32) -> (i32, i32, i32, i32) {
    %c0_i32 = arith.constant 0 : i32
    %c0_i32_0 = arith.constant 0 : i32
    %c0_i32_1 = arith.constant 0 : i32
    %c0_i32_2 = arith.constant 0 : i32
    return %arg0, %c0_i32, %c0_i32_0, %c0_i32_1 : i32, i32, i32, i32
  }
  func.func @transform_1(%arg0: i32, %arg1: i32) -> (i32, i32) {
    %c0_i32 = arith.constant 0 : i32
    %c0_i32_0 = arith.constant 0 : i32
    %c0_i32_1 = arith.constant 0 : i32
    return %c0_i32, %c0_i32_0 : i32, i32
  }
  func.func @transform_2(%arg0: i32, %arg1: i32) -> (i32, i32) {
    %c0_i32 = arith.constant 0 : i32
    %c0_i32_0 = arith.constant 0 : i32
    %c0_i32_1 = arith.constant 0 : i32
    return %c0_i32, %c0_i32_0 : i32, i32
  }
  func.func @transform_3(%arg0: i32, %arg1: i32) -> (i32, i32, i32) {
    %c0_i32 = arith.constant 0 : i32
    %c0_i32_0 = arith.constant 0 : i32
    return %arg0, %c0_i32, %arg1 : i32, i32, i32
  }
}

</mosaic_0001>

<llo_original>
// kernel: tpu_custom_call.1
$region0: #{tpu_custom_call.1}
  #allocation0 [shape = 'u32[]', space=smem, size = 0x4, offset = 0x4, fixed_abs, tag = 'smem constant byte address 0x4 - core index']
  #allocation1 [shape = 'u32[144,128]{1,0:T(1,128)}', space=vmem, size = 0x12000, scoped, tag = 'internal scratch']
  #allocation2 [shape = 'bf16[36,256]{1,0:T(8,128)(2,1)}', space=vmem, size = 0x5000, scoped, tag = 'scratch operand']
  %s0 = inlined_call_operand.vmem [shape: bf16[2,4,18,128], index: 0, kind: input, shape index: {}]
  %s1 = inlined_call_operand.vmem [shape: bf16[8,36], index: 1, kind: input, shape index: {}]
  %s2 = inlined_call_operand.vmem [shape: f32[8,1], index: 2, kind: input, shape index: {}]
  %s3 = inlined_call_operand.hbm [shape: bf16[2,8,256], index: 3, kind: output, shape index: {}]
  %s4 = sld [smem:[#allocation0]]
  $region45: #{tpu_custom_call.1} parent=0
    _
  %s6 = ssub.s32 1, %s4
  %s7 = scalar_select 0, %s6, %s4
  $region1: #{tpu_custom_call.1} parent=0
    #allocation3 [shape = 'u8[8192]{0}', space=vmem, size = 0x2000, scoped, tag = 'output window, operand 0']
    #allocation4 [shape = 's32[2]{0}', space=sflag, size = 0x8, scoped, tag = 'scoped memory for tpu_custom_call.1']
    %8 = vsyncpa [#allocation4], 0
    %s9 = scalar_lea.sflag [#allocation4], 1
    %10 = vsyncpa %s9, 0
    loop: start=0, step=1, limit=4
    $region2: #{tpu_custom_call.1} parent=1 // loop_pre_header
      _
    $region3: #{tpu_custom_call.1} parent=1 // loop_header
      %s12 = sphi 0, %s16
      %p13 = scmp.ge.s32.totalorder %s12, 4
      %s19 = sphi 0, %s31
      %s20 = sphi 0, %s27
      %s21 = sphi 0, %s19
      %s22 = sphi 0, %s20
      %s23 = sphi 0, %s21
      %s24 = sphi 0, %s22
      %s34 = sphi 0, %s36
      %s37 = sphi 0, %s34
      %s38 = sphi 0, %s37
      %s54 = sphi 0, %s38
      %s58 = sphi 0, %s58
      %s60 = sphi 0, %s58
      %s61 = sphi 0, %s60
      %s75 = sphi 0, %s61
      %s79 = sphi 0, %s79
      %s81 = sphi 0, %s79
      %s82 = sphi 0, %s81
      %s96 = sphi 0, %s82
      %s104 = sphi 0, %s106
      %s107 = sphi 0, %s104
      %s108 = sphi 0, %s107
      %s124 = sphi 0, %s108
    $region4: #{tpu_custom_call.1} parent=1 // loop_header_branch
      %15 = sbr.rel (%p13) target = $region8
    $region5: #{tpu_custom_call.1} parent=1 // loop_body
      %s17 = ssub.s32 %s12, 1
      %s18 = ssub.s32 %s12, 2
      %s25 = sadd.s32 1, %s20
      %p26 = scmp.ge.s32.totalorder %s25, 1
      %s27 = scalar_select %p26, 0, %s25
      %s28 = sadd.s32 1, %s19
      %s29 = scalar_select %p26, %s28, %s19
      %p30 = scmp.ge.s32.totalorder %s29, 2
      %s31 = scalar_select %p30, 0, %s29
      %s32 = ssub.s32 %s19, %s31
      %p33 = scmp.eq.s32.totalorder %s32, 0
      %s35 = sadd.s32 %s34, 1
      %s36 = scalar_select %p33, %s34, %s35
      %p39 = pneg %p33
      %p40 = scmp.eq.s32.totalorder %s12, 1
      %p41 = por %p39, %p40
      %p42 = scmp.ne.s32.totalorder %s34, %s37
      %p43 = scmp.eq.s32.totalorder %s12, 0
      %p44 = por %p42, %p43
      %p45 = scmp.ne.s32.totalorder %s34, %s37
      %p46 = scmp.eq.s32.totalorder %s17, 1
      %p47 = por %p45, %p46
      %p48 = scmp.ne.s32.totalorder %s37, %s38
      %p49 = scmp.eq.s32.totalorder %s17, 0
      %p50 = por %p48, %p49
      %p51 = scmp.ne.s32.totalorder %s37, %s38
      %p52 = scmp.eq.s32.totalorder %s18, 1
      %p53 = por %p51, %p52
      %p55 = scmp.ne.s32.totalorder %s38, %s54
      %p56 = scmp.eq.s32.totalorder %s18, 0
      %p57 = por %p55, %p56
      %s59 = sadd.s32 %s58, 1
      %p62 = scmp.eq.s32.totalorder %s12, 1
      %p63 = scmp.ne.s32.totalorder %s58, %s60
      %p64 = scmp.eq.s32.totalorder %s12, 0
      %p65 = por %p63, %p64
      %p66 = scmp.ne.s32.totalorder %s58, %s60
      %p67 = scmp.eq.s32.totalorder %s17, 1
      %p68 = por %p66, %p67
      %p69 = scmp.ne.s32.totalorder %s60, %s61
      %p70 = scmp.eq.s32.totalorder %s17, 0
      %p71 = por %p69, %p70
      %p72 = scmp.ne.s32.totalorder %s60, %s61
      %p73 = scmp.eq.s32.totalorder %s18, 1
      %p74 = por %p72, %p73
      %p76 = scmp.ne.s32.totalorder %s61, %s75
      %p77 = scmp.eq.s32.totalorder %s18, 0
      %p78 = por %p76, %p77
      %s80 = sadd.s32 %s79, 1
      %p83 = scmp.eq.s32.totalorder %s12, 1
      %p84 = scmp.ne.s32.totalorder %s79, %s81
      %p85 = scmp.eq.s32.totalorder %s12, 0
      %p86 = por %p84, %p85
      %p87 = scmp.ne.s32.totalorder %s79, %s81
      %p88 = scmp.eq.s32.totalorder %s17, 1
      %p89 = por %p87, %p88
      %p90 = scmp.ne.s32.totalorder %s81, %s82
      %p91 = scmp.eq.s32.totalorder %s17, 0
      %p92 = por %p90, %p91
      %p93 = scmp.ne.s32.totalorder %s81, %s82
      %p94 = scmp.eq.s32.totalorder %s18, 1
      %p95 = por %p93, %p94
      %p97 = scmp.ne.s32.totalorder %s82, %s96
      %p98 = scmp.eq.s32.totalorder %s18, 0
      %p99 = por %p97, %p98
      %s100 = ssub.s32 %s19, %s31
      %s101 = ssub.s32 %s20, %s27
      %s102 = sor.u32 %s100, %s101
      %p103 = scmp.eq.s32.totalorder %s102, 0
      %s105 = sadd.s32 %s104, 1
      %s106 = scalar_select %p103, %s104, %s105
      %p109 = pneg %p103
      %p110 = scmp.eq.s32.totalorder %s12, 1
      %p111 = por %p109, %p110
      %p112 = scmp.ne.s32.totalorder %s104, %s107
      %p113 = scmp.eq.s32.totalorder %s12, 0
      %p114 = por %p112, %p113
      %p115 = scmp.ne.s32.totalorder %s104, %s107
      %p116 = scmp.eq.s32.totalorder %s17, 1
      %p117 = por %p115, %p116
      %p118 = scmp.ne.s32.totalorder %s107, %s108
      %p119 = scmp.eq.s32.totalorder %s17, 0
      %p120 = por %p118, %p119
      %p121 = scmp.ne.s32.totalorder %s107, %s108
      %p122 = scmp.eq.s32.totalorder %s18, 1
      %p123 = por %p121, %p122
      %p125 = scmp.ne.s32.totalorder %s108, %s124
      %p126 = scmp.eq.s32.totalorder %s18, 0
      %p127 = por %p125, %p126
      %p128 = scmp.le.s32.totalorder 1, %s12
      %p129 = scmp.lt.s32.totalorder %s12, 3
      %p130 = pnand %p128, %p129
      %p131 = pneg %p130
      // Predicated region
      $region9: #{tpu_custom_call.1} parent=5 // pred_check
        _
      $region10: #{tpu_custom_call.1} parent=5 // pred_check_branch
        %133 = sbr.rel (%p130) target = $region12
      $region11: #{tpu_custom_call.1} parent=5 // pred_region
        %s134 = ssub.s32 %s12, 1
        // Predicated region
        $region13: #{tpu_custom_call.1} parent=11 // pred_check
          %p135 = pneg %p71
        $region14: #{tpu_custom_call.1} parent=11 // pred_check_branch
          %137 = sbr.rel (%p135) target = $region16
        $region15: #{tpu_custom_call.1} parent=11 // pred_region
          _
        $region16: #{tpu_custom_call.1} parent=11 // pred_fallthru
          _
        // Predicated region
        $region17: #{tpu_custom_call.1} parent=11 // pred_check
          %p138 = pneg %p92
        $region18: #{tpu_custom_call.1} parent=11 // pred_check_branch
          %140 = sbr.rel (%p138) target = $region20
        $region19: #{tpu_custom_call.1} parent=11 // pred_region
          _
        $region20: #{tpu_custom_call.1} parent=11 // pred_fallthru
          _
      $region12: #{tpu_custom_call.1} parent=5 // pred_fallthru
        _
      %p141 = scmp.lt.s32.totalorder %s12, 2
      // Predicated region
      $region21: #{tpu_custom_call.1} parent=5 // pred_check
        %p142 = pneg %p141
      $region22: #{tpu_custom_call.1} parent=5 // pred_check_branch
        %144 = sbr.rel (%p142) target = $region24
      $region23: #{tpu_custom_call.1} parent=5 // pred_region
        // Predicated region
        $region25: #{tpu_custom_call.1} parent=23 // pred_check
          %p145 = pneg %p44
        $region26: #{tpu_custom_call.1} parent=23 // pred_check_branch
          %147 = sbr.rel (%p145) target = $region28
        $region27: #{tpu_custom_call.1} parent=23 // pred_region
          %p148 = scmp.lt.s32.totalorder %s19, 1
          %s149 = scalar_select %p148, %s19, 1
          %s150 = smul.addr %s149, 12
          %s151 = smul.addr %s150, 4
          %s152 = scalar_lea.vmem %s0, %s151
        $region28: #{tpu_custom_call.1} parent=23 // pred_fallthru
          _
      $region24: #{tpu_custom_call.1} parent=5 // pred_fallthru
        _
      %p153 = scmp.le.s32.totalorder 1, %s12
      %p154 = scmp.lt.s32.totalorder %s12, 3
      %p155 = pnand %p153, %p154
      %p156 = pneg %p155
      // Predicated region
      $region29: #{tpu_custom_call.1} parent=5 // pred_check
        _
      $region30: #{tpu_custom_call.1} parent=5 // pred_check_branch
        %158 = sbr.rel (%p155) target = $region32
      $region31: #{tpu_custom_call.1} parent=5 // pred_region
        %s159 = ssub.s32 %s12, 1
        %p160 = scmp.lt.s32.totalorder %s21, 1
        %s161 = scalar_select %p160, %s21, 1
        %s162 = smul.addr %s161, 12
        %s163 = smul.addr %s162, 4
        %s164 = scalar_lea.vmem %s0, %s163
        %p165 = pneg %p50
        %p166 = pneg %p47
        %p167 = pneg %p71
        %p168 = pneg %p68
        %p169 = pneg %p92
        %p170 = pneg %p89
        %p171 = pneg %p120
        %p172 = pneg %p117
        %s173 = sand.u32 %s107, 1
        %s174 = scalar_lea.sflag [#allocation4], %s173
        %s175 = sand.u32 %s107, 1
        %s176 = smul.addr %s175, 8
        %s177 = scalar_lea.vmem [#allocation3], %s176
        %p178 = scmp.lt.s32.totalorder %s21, 1
        %s179 = scalar_select %p178, %s21, 1
        %s180 = smul.addr %s179, 12
        %s181 = smul.addr %s180, 4
        %s182 = scalar_lea.vmem %s0, %s181
        %s183 = smul.u32 2, %s22
        %s185 = smul.u32 %s22, 16
        %s186 = sshra.s32 %s185, 3
        %s187 = sand.u32 %s185, 7
        %s188 = smul.addr %s186, 4
        %s189 = scalar_lea.vmem %s182, %s188
        %v190 = vld [vmem:[%s189] sm:$0xf]
        %v191 = vld [vmem:[%s189 + $0x4] sm:$0xf]
        %v192 = vld [vmem:[%s189 + $0x8] sm:$0x1]
        %v193 = vld [vmem:[%s189 + $0xc] sm:$0xf]
        %v194 = vld [vmem:[%s189 + $0x10] sm:$0xf]
        %v195 = vld [vmem:[%s189 + $0x14] sm:$0x1]
        %v196 = vld [vmem:[%s189 + $0x18] sm:$0xf]
        %v197 = vld [vmem:[%s189 + $0x1c] sm:$0xf]
        %v198 = vld [vmem:[%s189 + $0x20] sm:$0x1]
        %v199 = vld [vmem:[%s189 + $0x24] sm:$0xf]
        %v200 = vld [vmem:[%s189 + $0x28] sm:$0xf]
        %v201 = vld [vmem:[%s189 + $0x2c] sm:$0x1]
        %v204 = vpack.i.b16 %v193, %v190
        %v205 = vshrl.u32 %v190, 16
        %v206 = vshrl.u32 %v193, 16
        %v207 = vpack.i.b16 %v206, %v205
        %v210 = vpack.i.b16 %v199, %v196
        %v211 = vshrl.u32 %v196, 16
        %v212 = vshrl.u32 %v199, 16
        %v213 = vpack.i.b16 %v212, %v211
        %v216 = vpack.i.b16 %v194, %v191
        %v217 = vshrl.u32 %v191, 16
        %v218 = vshrl.u32 %v194, 16
        %v219 = vpack.i.b16 %v218, %v217
        %v222 = vpack.i.b16 %v200, %v197
        %v223 = vshrl.u32 %v197, 16
        %v224 = vshrl.u32 %v200, 16
        %v225 = vpack.i.b16 %v224, %v223
        %v228 = vunpack.c.l.s4 1983009808
        %v229 = vunpack.c.0.s8 %v228
        %v230 = vlaneseq
        %v231 = vshrl.u32 %v230, 7
        %v232 = vsub.s32 %v229, %v231
        %v233 = vrot.slane %v204, %v232
        %v236 = vunpack.c.l.s4 1983009808
        %v237 = vunpack.c.0.s8 %v236
        %v238 = vlaneseq
        %v239 = vshrl.u32 %v238, 7
        %v240 = vsub.s32 %v237, %v239
        %v241 = vrot.slane %v210, %v240
        %v242 = vcombine.low %v233, %v241
        %v243 = vcombine.high %v233, %v241
        %v245 = vunpack.c.l.s4 1934713408
        %v246 = vunpack.c.0.s8 %v245
        %v247 = vlaneseq
        %v248 = vshrl.u32 %v247, 7
        %v249 = vsub.s32 %v246, %v248
        %v250 = vrot.slane %v242, %v249
        %v252 = vunpack.c.l.s4 1934713408
        %v253 = vunpack.c.0.s8 %v252
        %v254 = vlaneseq
        %v255 = vshrl.u32 %v254, 7
        %v256 = vsub.s32 %v253, %v255
        %v257 = vrot.slane %v243, %v256
        %v258 = vcombine.high %v250, 0
        %v259 = vcombine.high %v257, 0
        %v262 = vunpack.c.l.s4 1983009808
        %v263 = vunpack.c.0.s8 %v262
        %v264 = vlaneseq
        %v265 = vshrl.u32 %v264, 7
        %v266 = vsub.s32 %v263, %v265
        %v267 = vrot.slane %v207, %v266
        %v270 = vunpack.c.l.s4 1983009808
        %v271 = vunpack.c.0.s8 %v270
        %v272 = vlaneseq
        %v273 = vshrl.u32 %v272, 7
        %v274 = vsub.s32 %v271, %v273
        %v275 = vrot.slane %v213, %v274
        %v276 = vcombine.low %v267, %v275
        %v277 = vcombine.high %v267, %v275
        %v279 = vunpack.c.l.s4 1934713408
        %v280 = vunpack.c.0.s8 %v279
        %v281 = vlaneseq
        %v282 = vshrl.u32 %v281, 7
        %v283 = vsub.s32 %v280, %v282
        %v284 = vrot.slane %v276, %v283
        %v286 = vunpack.c.l.s4 1934713408
        %v287 = vunpack.c.0.s8 %v286
        %v288 = vlaneseq
        %v289 = vshrl.u32 %v288, 7
        %v290 = vsub.s32 %v287, %v289
        %v291 = vrot.slane %v277, %v290
        %v292 = vcombine.high %v284, 0
        %v293 = vcombine.high %v291, 0
        %v296 = vunpack.c.l.s4 1983009808
        %v297 = vunpack.c.0.s8 %v296
        %v298 = vlaneseq
        %v299 = vshrl.u32 %v298, 7
        %v300 = vsub.s32 %v297, %v299
        %v301 = vrot.slane %v216, %v300
        %v304 = vunpack.c.l.s4 1983009808
        %v305 = vunpack.c.0.s8 %v304
        %v306 = vlaneseq
        %v307 = vshrl.u32 %v306, 7
        %v308 = vsub.s32 %v305, %v307
        %v309 = vrot.slane %v222, %v308
        %v310 = vcombine.low %v301, %v309
        %v311 = vcombine.high %v301, %v309
        %v313 = vunpack.c.l.s4 1934713408
        %v314 = vunpack.c.0.s8 %v313
        %v315 = vlaneseq
        %v316 = vshrl.u32 %v315, 7
        %v317 = vsub.s32 %v314, %v316
        %v318 = vrot.slane %v310, %v317
        %v320 = vunpack.c.l.s4 1934713408
        %v321 = vunpack.c.0.s8 %v320
        %v322 = vlaneseq
        %v323 = vshrl.u32 %v322, 7
        %v324 = vsub.s32 %v321, %v323
        %v325 = vrot.slane %v311, %v324
        %v326 = vcombine.high %v318, 0
        %v327 = vcombine.high %v325, 0
        %v330 = vunpack.c.l.s4 1983009808
        %v331 = vunpack.c.0.s8 %v330
        %v332 = vlaneseq
        %v333 = vshrl.u32 %v332, 7
        %v334 = vsub.s32 %v331, %v333
        %v335 = vrot.slane %v219, %v334
        %v338 = vunpack.c.l.s4 1983009808
        %v339 = vunpack.c.0.s8 %v338
        %v340 = vlaneseq
        %v341 = vshrl.u32 %v340, 7
        %v342 = vsub.s32 %v339, %v341
        %v343 = vrot.slane %v225, %v342
        %v344 = vcombine.low %v335, %v343
        %v345 = vcombine.high %v335, %v343
        %v347 = vunpack.c.l.s4 1934713408
        %v348 = vunpack.c.0.s8 %v347
        %v349 = vlaneseq
        %v350 = vshrl.u32 %v349, 7
        %v351 = vsub.s32 %v348, %v350
        %v352 = vrot.slane %v344, %v351
        %v354 = vunpack.c.l.s4 1934713408
        %v355 = vunpack.c.0.s8 %v354
        %v356 = vlaneseq
        %v357 = vshrl.u32 %v356, 7
        %v358 = vsub.s32 %v355, %v357
        %v359 = vrot.slane %v345, %v358
        %v360 = vcombine.high %v352, 0
        %v361 = vcombine.high %v359, 0
        %v363 = vunpack.c.l.b16 %v284
        %v364 = vpack.c.b16 %v363, %v363
        %365 = vrot.lane.b32.xlu0 %v364, 16
        %v366 = vpop.permute.xlu0 %365
        %v368 = vunpack.c.l.b16 %v258
        %v369 = vpack.c.b16 %v368, %v368
        %370 = vrot.lane.b32.xlu0 %v369, 32
        %v371 = vpop.permute.xlu0 %370
        %v373 = vunpack.c.l.b16 %v292
        %v374 = vpack.c.b16 %v373, %v373
        %375 = vrot.lane.b32.xlu0 %v374, 48
        %v376 = vpop.permute.xlu0 %375
        %v378 = vunpack.c.l.b16 %v257
        %v379 = vpack.c.b16 %v378, %v378
        %380 = vrot.lane.b32.xlu0 %v379, 64
        %v381 = vpop.permute.xlu0 %380
        %v383 = vunpack.c.l.b16 %v291
        %v384 = vpack.c.b16 %v383, %v383
        %385 = vrot.lane.b32.xlu0 %v384, 80
        %v386 = vpop.permute.xlu0 %385
        %v388 = vunpack.c.l.b16 %v259
        %v389 = vpack.c.b16 %v388, %v388
        %390 = vrot.lane.b32.xlu0 %v389, 96
        %v391 = vpop.permute.xlu0 %390
        %v393 = vunpack.c.l.b16 %v293
        %v394 = vpack.c.b16 %v393, %v393
        %395 = vrot.lane.b32.xlu0 %v394, 112
        %v396 = vpop.permute.xlu0 %395
        %v398 = vunpack.c.l.b16 %v352
        %v399 = vpack.c.b16 %v398, %v398
        %400 = vrot.lane.b32.xlu0 %v399, 16
        %v401 = vpop.permute.xlu0 %400
        %v403 = vunpack.c.l.b16 %v326
        %v404 = vpack.c.b16 %v403, %v403
        %405 = vrot.lane.b32.xlu0 %v404, 32
        %v406 = vpop.permute.xlu0 %405
        %v408 = vunpack.c.l.b16 %v360
        %v409 = vpack.c.b16 %v408, %v408
        %410 = vrot.lane.b32.xlu0 %v409, 48
        %v411 = vpop.permute.xlu0 %410
        %v413 = vunpack.c.l.b16 %v325
        %v414 = vpack.c.b16 %v413, %v413
        %415 = vrot.lane.b32.xlu0 %v414, 64
        %v416 = vpop.permute.xlu0 %415
        %v418 = vunpack.c.l.b16 %v359
        %v419 = vpack.c.b16 %v418, %v418
        %420 = vrot.lane.b32.xlu0 %v419, 80
        %v421 = vpop.permute.xlu0 %420
        %v423 = vunpack.c.l.b16 %v327
        %v424 = vpack.c.b16 %v423, %v423
        %425 = vrot.lane.b32.xlu0 %v424, 96
        %v426 = vpop.permute.xlu0 %425
        %v428 = vunpack.c.l.b16 %v361
        %v429 = vpack.c.b16 %v428, %v428
        %430 = vrot.lane.b32.xlu0 %v429, 112
        %v431 = vpop.permute.xlu0 %430
        %vm432 = vcmask 130048
        %v435 = vsel %vm432, %v250, %v366
        %vm436 = vcmask 261120
        %v438 = vsel %vm436, %v435, %v371
        %vm439 = vcmask 392192
        %v441 = vsel %vm439, %v438, %v376
        %vm442 = vcmask 523264
        %v444 = vsel %vm442, %v441, %v381
        %vm445 = vcmask 654336
        %v447 = vsel %vm445, %v444, %v386
        %vm448 = vcmask 785408
        %v450 = vsel %vm448, %v447, %v391
        %vm451 = vcmask 916480
        %v453 = vsel %vm451, %v450, %v396
        %v456 = vsel %vm432, %v318, %v401
        %v458 = vsel %vm436, %v456, %v406
        %v460 = vsel %vm439, %v458, %v411
        %v462 = vsel %vm442, %v460, %v416
        %v464 = vsel %vm445, %v462, %v421
        %v466 = vsel %vm448, %v464, %v426
        %v468 = vsel %vm451, %v466, %v431
        %v471 = vunpack.c.l.b16 %v453
        %v472 = vunpack.c.l.b16 %v468
        %v473 = vpack.c.b16 %v472, %v471
        %475 = vst [vmem:[#allocation2] sm:$0x33] %v473
        %484 = vrot.lane.b32.xlu0 %v190, 127
        %v485 = vpop.permute.xlu0 %484
        %486 = vrot.lane.b32.xlu0 %v191, 127
        %v487 = vpop.permute.xlu0 %486
        %488 = vrot.lane.b32.xlu0 %v193, 127
        %v489 = vpop.permute.xlu0 %488
        %490 = vrot.lane.b32.xlu0 %v194, 127
        %v491 = vpop.permute.xlu0 %490
        %492 = vrot.lane.b32.xlu0 %v196, 127
        %v493 = vpop.permute.xlu0 %492
        %494 = vrot.lane.b32.xlu0 %v197, 127
        %v495 = vpop.permute.xlu0 %494
        %496 = vrot.lane.b32.xlu0 %v199, 127
        %v497 = vpop.permute.xlu0 %496
        %498 = vrot.lane.b32.xlu0 %v200, 127
        %v499 = vpop.permute.xlu0 %498
        %v502 = vpack.i.b16 %v489, %v485
        %v503 = vshrl.u32 %v485, 16
        %v504 = vshrl.u32 %v489, 16
        %v505 = vpack.i.b16 %v504, %v503
        %v508 = vpack.i.b16 %v497, %v493
        %v509 = vshrl.u32 %v493, 16
        %v510 = vshrl.u32 %v497, 16
        %v511 = vpack.i.b16 %v510, %v509
        %v514 = vpack.i.b16 %v491, %v487
        %v515 = vshrl.u32 %v487, 16
        %v516 = vshrl.u32 %v491, 16
        %v517 = vpack.i.b16 %v516, %v515
        %v520 = vpack.i.b16 %v499, %v495
        %v521 = vshrl.u32 %v495, 16
        %v522 = vshrl.u32 %v499, 16
        %v523 = vpack.i.b16 %v522, %v521
        %v526 = vunpack.c.l.s4 1983009808
        %v527 = vunpack.c.0.s8 %v526
        %v528 = vlaneseq
        %v529 = vshrl.u32 %v528, 7
        %v530 = vsub.s32 %v527, %v529
        %v531 = vrot.slane %v502, %v530
        %v534 = vunpack.c.l.s4 1983009808
        %v535 = vunpack.c.0.s8 %v534
        %v536 = vlaneseq
        %v537 = vshrl.u32 %v536, 7
        %v538 = vsub.s32 %v535, %v537
        %v539 = vrot.slane %v508, %v538
        %v540 = vcombine.low %v531, %v539
        %v541 = vcombine.high %v531, %v539
        %v543 = vunpack.c.l.s4 1934713408
        %v544 = vunpack.c.0.s8 %v543
        %v545 = vlaneseq
        %v546 = vshrl.u32 %v545, 7
        %v547 = vsub.s32 %v544, %v546
        %v548 = vrot.slane %v540, %v547
        %v550 = vunpack.c.l.s4 1934713408
        %v551 = vunpack.c.0.s8 %v550
        %v552 = vlaneseq
        %v553 = vshrl.u32 %v552, 7
        %v554 = vsub.s32 %v551, %v553
        %v555 = vrot.slane %v541, %v554
        %v556 = vcombine.high %v548, 0
        %v557 = vcombine.high %v555, 0
        %v560 = vunpack.c.l.s4 1983009808
        %v561 = vunpack.c.0.s8 %v560
        %v562 = vlaneseq
        %v563 = vshrl.u32 %v562, 7
        %v564 = vsub.s32 %v561, %v563
        %v565 = vrot.slane %v505, %v564
        %v568 = vunpack.c.l.s4 1983009808
        %v569 = vunpack.c.0.s8 %v568
        %v570 = vlaneseq
        %v571 = vshrl.u32 %v570, 7
        %v572 = vsub.s32 %v569, %v571
        %v573 = vrot.slane %v511, %v572
        %v574 = vcombine.low %v565, %v573
        %v575 = vcombine.high %v565, %v573
        %v577 = vunpack.c.l.s4 1934713408
        %v578 = vunpack.c.0.s8 %v577
        %v579 = vlaneseq
        %v580 = vshrl.u32 %v579, 7
        %v581 = vsub.s32 %v578, %v580
        %v582 = vrot.slane %v574, %v581
        %v584 = vunpack.c.l.s4 1934713408
        %v585 = vunpack.c.0.s8 %v584
        %v586 = vlaneseq
        %v587 = vshrl.u32 %v586, 7
        %v588 = vsub.s32 %v585, %v587
        %v589 = vrot.slane %v575, %v588
        %v590 = vcombine.high %v582, 0
        %v591 = vcombine.high %v589, 0
        %v594 = vunpack.c.l.s4 1983009808
        %v595 = vunpack.c.0.s8 %v594
        %v596 = vlaneseq
        %v597 = vshrl.u32 %v596, 7
        %v598 = vsub.s32 %v595, %v597
        %v599 = vrot.slane %v514, %v598
        %v602 = vunpack.c.l.s4 1983009808
        %v603 = vunpack.c.0.s8 %v602
        %v604 = vlaneseq
        %v605 = vshrl.u32 %v604, 7
        %v606 = vsub.s32 %v603, %v605
        %v607 = vrot.slane %v520, %v606
        %v608 = vcombine.low %v599, %v607
        %v609 = vcombine.high %v599, %v607
        %v611 = vunpack.c.l.s4 1934713408
        %v612 = vunpack.c.0.s8 %v611
        %v613 = vlaneseq
        %v614 = vshrl.u32 %v613, 7
        %v615 = vsub.s32 %v612, %v614
        %v616 = vrot.slane %v608, %v615
        %v618 = vunpack.c.l.s4 1934713408
        %v619 = vunpack.c.0.s8 %v618
        %v620 = vlaneseq
        %v621 = vshrl.u32 %v620, 7
        %v622 = vsub.s32 %v619, %v621
        %v623 = vrot.slane %v609, %v622
        %v624 = vcombine.high %v616, 0
        %v625 = vcombine.high %v623, 0
        %v628 = vunpack.c.l.s4 1983009808
        %v629 = vunpack.c.0.s8 %v628
        %v630 = vlaneseq
        %v631 = vshrl.u32 %v630, 7
        %v632 = vsub.s32 %v629, %v631
        %v633 = vrot.slane %v517, %v632
        %v636 = vunpack.c.l.s4 1983009808
        %v637 = vunpack.c.0.s8 %v636
        %v638 = vlaneseq
        %v639 = vshrl.u32 %v638, 7
        %v640 = vsub.s32 %v637, %v639
        %v641 = vrot.slane %v523, %v640
        %v642 = vcombine.low %v633, %v641
        %v643 = vcombine.high %v633, %v641
        %v645 = vunpack.c.l.s4 1934713408
        %v646 = vunpack.c.0.s8 %v645
        %v647 = vlaneseq
        %v648 = vshrl.u32 %v647, 7
        %v649 = vsub.s32 %v646, %v648
        %v650 = vrot.slane %v642, %v649
        %v652 = vunpack.c.l.s4 1934713408
        %v653 = vunpack.c.0.s8 %v652
        %v654 = vlaneseq
        %v655 = vshrl.u32 %v654, 7
        %v656 = vsub.s32 %v653, %v655
        %v657 = vrot.slane %v643, %v656
        %v658 = vcombine.high %v650, 0
        %v659 = vcombine.high %v657, 0
        %v661 = vunpack.c.l.b16 %v582
        %v662 = vpack.c.b16 %v661, %v661
        %663 = vrot.lane.b32.xlu0 %v662, 16
        %v664 = vpop.permute.xlu0 %663
        %v666 = vunpack.c.l.b16 %v556
        %v667 = vpack.c.b16 %v666, %v666
        %668 = vrot.lane.b32.xlu0 %v667, 32
        %v669 = vpop.permute.xlu0 %668
        %v671 = vunpack.c.l.b16 %v590
        %v672 = vpack.c.b16 %v671, %v671
        %673 = vrot.lane.b32.xlu0 %v672, 48
        %v674 = vpop.permute.xlu0 %673
        %v676 = vunpack.c.l.b16 %v555
        %v677 = vpack.c.b16 %v676, %v676
        %678 = vrot.lane.b32.xlu0 %v677, 64
        %v679 = vpop.permute.xlu0 %678
        %v681 = vunpack.c.l.b16 %v589
        %v682 = vpack.c.b16 %v681, %v681
        %683 = vrot.lane.b32.xlu0 %v682, 80
        %v684 = vpop.permute.xlu0 %683
        %v686 = vunpack.c.l.b16 %v557
        %v687 = vpack.c.b16 %v686, %v686
        %688 = vrot.lane.b32.xlu0 %v687, 96
        %v689 = vpop.permute.xlu0 %688
        %v691 = vunpack.c.l.b16 %v591
        %v692 = vpack.c.b16 %v691, %v691
        %693 = vrot.lane.b32.xlu0 %v692, 112
        %v694 = vpop.permute.xlu0 %693
        %v696 = vunpack.c.l.b16 %v650
        %v697 = vpack.c.b16 %v696, %v696
        %698 = vrot.lane.b32.xlu0 %v697, 16
        %v699 = vpop.permute.xlu0 %698
        %v701 = vunpack.c.l.b16 %v624
        %v702 = vpack.c.b16 %v701, %v701
        %703 = vrot.lane.b32.xlu0 %v702, 32
        %v704 = vpop.permute.xlu0 %703
        %v706 = vunpack.c.l.b16 %v658
        %v707 = vpack.c.b16 %v706, %v706
        %708 = vrot.lane.b32.xlu0 %v707, 48
        %v709 = vpop.permute.xlu0 %708
        %v711 = vunpack.c.l.b16 %v623
        %v712 = vpack.c.b16 %v711, %v711
        %713 = vrot.lane.b32.xlu0 %v712, 64
        %v714 = vpop.permute.xlu0 %713
        %v716 = vunpack.c.l.b16 %v657
        %v717 = vpack.c.b16 %v716, %v716
        %718 = vrot.lane.b32.xlu0 %v717, 80
        %v719 = vpop.permute.xlu0 %718
        %v721 = vunpack.c.l.b16 %v625
        %v722 = vpack.c.b16 %v721, %v721
        %723 = vrot.lane.b32.xlu0 %v722, 96
        %v724 = vpop.permute.xlu0 %723
        %v726 = vunpack.c.l.b16 %v659
        %v727 = vpack.c.b16 %v726, %v726
        %728 = vrot.lane.b32.xlu0 %v727, 112
        %v729 = vpop.permute.xlu0 %728
        %v732 = vsel %vm432, %v548, %v664
        %v734 = vsel %vm436, %v732, %v669
        %v736 = vsel %vm439, %v734, %v674
        %v738 = vsel %vm442, %v736, %v679
        %v740 = vsel %vm445, %v738, %v684
        %v742 = vsel %vm448, %v740, %v689
        %v744 = vsel %vm451, %v742, %v694
        %v747 = vsel %vm432, %v616, %v699
        %v749 = vsel %vm436, %v747, %v704
        %v751 = vsel %vm439, %v749, %v709
        %v753 = vsel %vm442, %v751, %v714
        %v755 = vsel %vm445, %v753, %v719
        %v757 = vsel %vm448, %v755, %v724
        %v759 = vsel %vm451, %v757, %v729
        %v762 = vunpack.c.l.b16 %v744
        %v763 = vunpack.c.l.b16 %v759
        %v764 = vpack.c.b16 %v763, %v762
        %v765 = vrot.slane %v764, 6
        %767 = vst [vmem:[#allocation2] sm:$0xcc] %v765
        %768 = vrot.lane.b32.xlu0 %v190, 126
        %v769 = vpop.permute.xlu0 %768
        %770 = vrot.lane.b32.xlu0 %v191, 126
        %v771 = vpop.permute.xlu0 %770
        %772 = vrot.lane.b32.xlu0 %v193, 126
        %v773 = vpop.permute.xlu0 %772
        %774 = vrot.lane.b32.xlu0 %v194, 126
        %v775 = vpop.permute.xlu0 %774
        %776 = vrot.lane.b32.xlu0 %v196, 126
        %v777 = vpop.permute.xlu0 %776
        %778 = vrot.lane.b32.xlu0 %v197, 126
        %v779 = vpop.permute.xlu0 %778
        %780 = vrot.lane.b32.xlu0 %v199, 126
        %v781 = vpop.permute.xlu0 %780
        %782 = vrot.lane.b32.xlu0 %v200, 126
        %v783 = vpop.permute.xlu0 %782
        %v786 = vpack.i.b16 %v773, %v769
        %v787 = vshrl.u32 %v769, 16
        %v788 = vshrl.u32 %v773, 16
        %v789 = vpack.i.b16 %v788, %v787
        %v792 = vpack.i.b16 %v781, %v777
        %v793 = vshrl.u32 %v777, 16
        %v794 = vshrl.u32 %v781, 16
        %v795 = vpack.i.b16 %v794, %v793
        %v798 = vpack.i.b16 %v775, %v771
        %v799 = vshrl.u32 %v771, 16
        %v800 = vshrl.u32 %v775, 16
        %v801 = vpack.i.b16 %v800, %v799
        %v804 = vpack.i.b16 %v783, %v779
        %v805 = vshrl.u32 %v779, 16
        %v806 = vshrl.u32 %v783, 16
        %v807 = vpack.i.b16 %v806, %v805
        %v810 = vunpack.c.l.s4 1983009808
        %v811 = vunpack.c.0.s8 %v810
        %v812 = vlaneseq
        %v813 = vshrl.u32 %v812, 7
        %v814 = vsub.s32 %v811, %v813
        %v815 = vrot.slane %v786, %v814
        %v818 = vunpack.c.l.s4 1983009808
        %v819 = vunpack.c.0.s8 %v818
        %v820 = vlaneseq
        %v821 = vshrl.u32 %v820, 7
        %v822 = vsub.s32 %v819, %v821
        %v823 = vrot.slane %v792, %v822
        %v824 = vcombine.low %v815, %v823
        %v825 = vcombine.high %v815, %v823
        %v827 = vunpack.c.l.s4 1934713408
        %v828 = vunpack.c.0.s8 %v827
        %v829 = vlaneseq
        %v830 = vshrl.u32 %v829, 7
        %v831 = vsub.s32 %v828, %v830
        %v832 = vrot.slane %v824, %v831
        %v834 = vunpack.c.l.s4 1934713408
        %v835 = vunpack.c.0.s8 %v834
        %v836 = vlaneseq
        %v837 = vshrl.u32 %v836, 7
        %v838 = vsub.s32 %v835, %v837
        %v839 = vrot.slane %v825, %v838
        %v840 = vcombine.high %v832, 0
        %v841 = vcombine.high %v839, 0
        %v844 = vunpack.c.l.s4 1983009808
        %v845 = vunpack.c.0.s8 %v844
        %v846 = vlaneseq
        %v847 = vshrl.u32 %v846, 7
        %v848 = vsub.s32 %v845, %v847
        %v849 = vrot.slane %v789, %v848
        %v852 = vunpack.c.l.s4 1983009808
        %v853 = vunpack.c.0.s8 %v852
        %v854 = vlaneseq
        %v855 = vshrl.u32 %v854, 7
        %v856 = vsub.s32 %v853, %v855
        %v857 = vrot.slane %v795, %v856
        %v858 = vcombine.low %v849, %v857
        %v859 = vcombine.high %v849, %v857
        %v861 = vunpack.c.l.s4 1934713408
        %v862 = vunpack.c.0.s8 %v861
        %v863 = vlaneseq
        %v864 = vshrl.u32 %v863, 7
        %v865 = vsub.s32 %v862, %v864
        %v866 = vrot.slane %v858, %v865
        %v868 = vunpack.c.l.s4 1934713408
        %v869 = vunpack.c.0.s8 %v868
        %v870 = vlaneseq
        %v871 = vshrl.u32 %v870, 7
        %v872 = vsub.s32 %v869, %v871
        %v873 = vrot.slane %v859, %v872
        %v874 = vcombine.high %v866, 0
        %v875 = vcombine.high %v873, 0
        %v878 = vunpack.c.l.s4 1983009808
        %v879 = vunpack.c.0.s8 %v878
        %v880 = vlaneseq
        %v881 = vshrl.u32 %v880, 7
        %v882 = vsub.s32 %v879, %v881
        %v883 = vrot.slane %v798, %v882
        %v886 = vunpack.c.l.s4 1983009808
        %v887 = vunpack.c.0.s8 %v886
        %v888 = vlaneseq
        %v889 = vshrl.u32 %v888, 7
        %v890 = vsub.s32 %v887, %v889
        %v891 = vrot.slane %v804, %v890
        %v892 = vcombine.low %v883, %v891
        %v893 = vcombine.high %v883, %v891
        %v895 = vunpack.c.l.s4 1934713408
        %v896 = vunpack.c.0.s8 %v895
        %v897 = vlaneseq
        %v898 = vshrl.u32 %v897, 7
        %v899 = vsub.s32 %v896, %v898
        %v900 = vrot.slane %v892, %v899
        %v902 = vunpack.c.l.s4 1934713408
        %v903 = vunpack.c.0.s8 %v902
        %v904 = vlaneseq
        %v905 = vshrl.u32 %v904, 7
        %v906 = vsub.s32 %v903, %v905
        %v907 = vrot.slane %v893, %v906
        %v908 = vcombine.high %v900, 0
        %v909 = vcombine.high %v907, 0
        %v912 = vunpack.c.l.s4 1983009808
        %v913 = vunpack.c.0.s8 %v912
        %v914 = vlaneseq
        %v915 = vshrl.u32 %v914, 7
        %v916 = vsub.s32 %v913, %v915
        %v917 = vrot.slane %v801, %v916
        %v920 = vunpack.c.l.s4 1983009808
        %v921 = vunpack.c.0.s8 %v920
        %v922 = vlaneseq
        %v923 = vshrl.u32 %v922, 7
        %v924 = vsub.s32 %v921, %v923
        %v925 = vrot.slane %v807, %v924
        %v926 = vcombine.low %v917, %v925
        %v927 = vcombine.high %v917, %v925
        %v929 = vunpack.c.l.s4 1934713408
        %v930 = vunpack.c.0.s8 %v929
        %v931 = vlaneseq
        %v932 = vshrl.u32 %v931, 7
        %v933 = vsub.s32 %v930, %v932
        %v934 = vrot.slane %v926, %v933
        %v936 = vunpack.c.l.s4 1934713408
        %v937 = vunpack.c.0.s8 %v936
        %v938 = vlaneseq
        %v939 = vshrl.u32 %v938, 7
        %v940 = vsub.s32 %v937, %v939
        %v941 = vrot.slane %v927, %v940
        %v942 = vcombine.high %v934, 0
        %v943 = vcombine.high %v941, 0
        %v945 = vunpack.c.l.b16 %v866
        %v946 = vpack.c.b16 %v945, %v945
        %947 = vrot.lane.b32.xlu0 %v946, 16
        %v948 = vpop.permute.xlu0 %947
        %v950 = vunpack.c.l.b16 %v840
        %v951 = vpack.c.b16 %v950, %v950
        %952 = vrot.lane.b32.xlu0 %v951, 32
        %v953 = vpop.permute.xlu0 %952
        %v955 = vunpack.c.l.b16 %v874
        %v956 = vpack.c.b16 %v955, %v955
        %957 = vrot.lane.b32.xlu0 %v956, 48
        %v958 = vpop.permute.xlu0 %957
        %v960 = vunpack.c.l.b16 %v839
        %v961 = vpack.c.b16 %v960, %v960
        %962 = vrot.lane.b32.xlu0 %v961, 64
        %v963 = vpop.permute.xlu0 %962
        %v965 = vunpack.c.l.b16 %v873
        %v966 = vpack.c.b16 %v965, %v965
        %967 = vrot.lane.b32.xlu0 %v966, 80
        %v968 = vpop.permute.xlu0 %967
        %v970 = vunpack.c.l.b16 %v841
        %v971 = vpack.c.b16 %v970, %v970
        %972 = vrot.lane.b32.xlu0 %v971, 96
        %v973 = vpop.permute.xlu0 %972
        %v975 = vunpack.c.l.b16 %v875
        %v976 = vpack.c.b16 %v975, %v975
        %977 = vrot.lane.b32.xlu0 %v976, 112
        %v978 = vpop.permute.xlu0 %977
        %v980 = vunpack.c.l.b16 %v934
        %v981 = vpack.c.b16 %v980, %v980
        %982 = vrot.lane.b32.xlu0 %v981, 16
        %v983 = vpop.permute.xlu0 %982
        %v985 = vunpack.c.l.b16 %v908
        %v986 = vpack.c.b16 %v985, %v985
        %987 = vrot.lane.b32.xlu0 %v986, 32
        %v988 = vpop.permute.xlu0 %987
        %v990 = vunpack.c.l.b16 %v942
        %v991 = vpack.c.b16 %v990, %v990
        %992 = vrot.lane.b32.xlu0 %v991, 48
        %v993 = vpop.permute.xlu0 %992
        %v995 = vunpack.c.l.b16 %v907
        %v996 = vpack.c.b16 %v995, %v995
        %997 = vrot.lane.b32.xlu0 %v996, 64
        %v998 = vpop.permute.xlu0 %997
        %v1000 = vunpack.c.l.b16 %v941
        %v1001 = vpack.c.b16 %v1000, %v1000
        %1002 = vrot.lane.b32.xlu0 %v1001, 80
        %v1003 = vpop.permute.xlu0 %1002
        %v1005 = vunpack.c.l.b16 %v909
        %v1006 = vpack.c.b16 %v1005, %v1005
        %1007 = vrot.lane.b32.xlu0 %v1006, 96
        %v1008 = vpop.permute.xlu0 %1007
        %v1010 = vunpack.c.l.b16 %v943
        %v1011 = vpack.c.b16 %v1010, %v1010
        %1012 = vrot.lane.b32.xlu0 %v1011, 112
        %v1013 = vpop.permute.xlu0 %1012
        %v1016 = vsel %vm432, %v832, %v948
        %v1018 = vsel %vm436, %v1016, %v953
        %v1020 = vsel %vm439, %v1018, %v958
        %v1022 = vsel %vm442, %v1020, %v963
        %v1024 = vsel %vm445, %v1022, %v968
        %v1026 = vsel %vm448, %v1024, %v973
        %v1028 = vsel %vm451, %v1026, %v978
        %v1031 = vsel %vm432, %v900, %v983
        %v1033 = vsel %vm436, %v1031, %v988
        %v1035 = vsel %vm439, %v1033, %v993
        %v1037 = vsel %vm442, %v1035, %v998
        %v1039 = vsel %vm445, %v1037, %v1003
        %v1041 = vsel %vm448, %v1039, %v1008
        %v1043 = vsel %vm451, %v1041, %v1013
        %v1046 = vunpack.c.l.b16 %v1028
        %v1047 = vunpack.c.l.b16 %v1043
        %v1048 = vpack.c.b16 %v1047, %v1046
        %1050 = vst [vmem:[#allocation2 + $0x8] sm:$0x33] %v1048
        %vm1051 = vsmask.f32 3328
        %vm1052 = vsmask.f32 7440
        %vm1053 = vmor %vm1051, %vm1052
        %v1055 = vrot.slane %v205, 4
        %v1056 = vshll.u32 %v190, 16
        %v1058 = vrot.slane %v1056, 5
        %v1059 = vor.u32 %v1055, %v1058
        %v1060 = vrot.slane %v1059, 4
        %v1061 = vshll.u32 %v191, 16
        %v1063 = vrot.slane %v1061, 5
        %v1064 = vsel %vm1053, %v1060, %v1063
        %v1066 = vrot.slane %v217, 4
        %v1067 = vor.u32 %v1066, %v1063
        %v1068 = vrot.slane %v1067, 4
        %v1070 = vshll.u32 %v192, 16
        %v1072 = vrot.slane %v1070, 5
        %v1073 = vsel %vm1053, %v1068, %v1072
        %v1075 = vrot.slane %v206, 4
        %v1076 = vshll.u32 %v193, 16
        %v1078 = vrot.slane %v1076, 5
        %v1079 = vor.u32 %v1075, %v1078
        %v1080 = vrot.slane %v1079, 4
        %v1081 = vshll.u32 %v194, 16
        %v1083 = vrot.slane %v1081, 5
        %v1084 = vsel %vm1053, %v1080, %v1083
        %v1086 = vrot.slane %v218, 4
        %v1087 = vor.u32 %v1086, %v1083
        %v1088 = vrot.slane %v1087, 4
        %v1090 = vshll.u32 %v195, 16
        %v1092 = vrot.slane %v1090, 5
        %v1093 = vsel %vm1053, %v1088, %v1092
        %v1095 = vrot.slane %v211, 4
        %v1096 = vshll.u32 %v196, 16
        %v1098 = vrot.slane %v1096, 5
        %v1099 = vor.u32 %v1095, %v1098
        %v1100 = vrot.slane %v1099, 4
        %v1101 = vshll.u32 %v197, 16
        %v1103 = vrot.slane %v1101, 5
        %v1104 = vsel %vm1053, %v1100, %v1103
        %v1106 = vrot.slane %v223, 4
        %v1107 = vor.u32 %v1106, %v1103
        %v1108 = vrot.slane %v1107, 4
        %v1110 = vshll.u32 %v198, 16
        %v1112 = vrot.slane %v1110, 5
        %v1113 = vsel %vm1053, %v1108, %v1112
        %v1115 = vrot.slane %v212, 4
        %v1116 = vshll.u32 %v199, 16
        %v1118 = vrot.slane %v1116, 5
        %v1119 = vor.u32 %v1115, %v1118
        %v1120 = vrot.slane %v1119, 4
        %v1121 = vshll.u32 %v200, 16
        %v1123 = vrot.slane %v1121, 5
        %v1124 = vsel %vm1053, %v1120, %v1123
        %v1126 = vrot.slane %v224, 4
        %v1127 = vor.u32 %v1126, %v1123
        %v1128 = vrot.slane %v1127, 4
        %v1130 = vshll.u32 %v201, 16
        %v1132 = vrot.slane %v1130, 5
        %v1133 = vsel %vm1053, %v1128, %v1132
        %v1136 = vpack.i.b16 %v1084, %v1064
        %v1137 = vshrl.u32 %v1064, 16
        %v1138 = vshrl.u32 %v1084, 16
        %v1139 = vpack.i.b16 %v1138, %v1137
        %v1142 = vpack.i.b16 %v1124, %v1104
        %v1143 = vshrl.u32 %v1104, 16
        %v1144 = vshrl.u32 %v1124, 16
        %v1145 = vpack.i.b16 %v1144, %v1143
        %v1148 = vpack.i.b16 %v1093, %v1073
        %v1149 = vshrl.u32 %v1073, 16
        %v1150 = vshrl.u32 %v1093, 16
        %v1151 = vpack.i.b16 %v1150, %v1149
        %v1154 = vpack.i.b16 %v1133, %v1113
        %v1155 = vshrl.u32 %v1113, 16
        %v1156 = vshrl.u32 %v1133, 16
        %v1157 = vpack.i.b16 %v1156, %v1155
        %v1160 = vunpack.c.l.s4 1983009808
        %v1161 = vunpack.c.0.s8 %v1160
        %v1162 = vlaneseq
        %v1163 = vshrl.u32 %v1162, 7
        %v1164 = vsub.s32 %v1161, %v1163
        %v1165 = vrot.slane %v1136, %v1164
        %v1168 = vunpack.c.l.s4 1983009808
        %v1169 = vunpack.c.0.s8 %v1168
        %v1170 = vlaneseq
        %v1171 = vshrl.u32 %v1170, 7
        %v1172 = vsub.s32 %v1169, %v1171
        %v1173 = vrot.slane %v1142, %v1172
        %v1174 = vcombine.low %v1165, %v1173
        %v1175 = vcombine.high %v1165, %v1173
        %v1177 = vunpack.c.l.s4 1934713408
        %v1178 = vunpack.c.0.s8 %v1177
        %v1179 = vlaneseq
        %v1180 = vshrl.u32 %v1179, 7
        %v1181 = vsub.s32 %v1178, %v1180
        %v1182 = vrot.slane %v1174, %v1181
        %v1184 = vunpack.c.l.s4 1934713408
        %v1185 = vunpack.c.0.s8 %v1184
        %v1186 = vlaneseq
        %v1187 = vshrl.u32 %v1186, 7
        %v1188 = vsub.s32 %v1185, %v1187
        %v1189 = vrot.slane %v1175, %v1188
        %v1190 = vcombine.high %v1182, 0
        %v1191 = vcombine.high %v1189, 0
        %v1194 = vunpack.c.l.s4 1983009808
        %v1195 = vunpack.c.0.s8 %v1194
        %v1196 = vlaneseq
        %v1197 = vshrl.u32 %v1196, 7
        %v1198 = vsub.s32 %v1195, %v1197
        %v1199 = vrot.slane %v1139, %v1198
        %v1202 = vunpack.c.l.s4 1983009808
        %v1203 = vunpack.c.0.s8 %v1202
        %v1204 = vlaneseq
        %v1205 = vshrl.u32 %v1204, 7
        %v1206 = vsub.s32 %v1203, %v1205
        %v1207 = vrot.slane %v1145, %v1206
        %v1208 = vcombine.low %v1199, %v1207
        %v1209 = vcombine.high %v1199, %v1207
        %v1211 = vunpack.c.l.s4 1934713408
        %v1212 = vunpack.c.0.s8 %v1211
        %v1213 = vlaneseq
        %v1214 = vshrl.u32 %v1213, 7
        %v1215 = vsub.s32 %v1212, %v1214
        %v1216 = vrot.slane %v1208, %v1215
        %v1218 = vunpack.c.l.s4 1934713408
        %v1219 = vunpack.c.0.s8 %v1218
        %v1220 = vlaneseq
        %v1221 = vshrl.u32 %v1220, 7
        %v1222 = vsub.s32 %v1219, %v1221
        %v1223 = vrot.slane %v1209, %v1222
        %v1224 = vcombine.high %v1216, 0
        %v1225 = vcombine.high %v1223, 0
        %v1228 = vunpack.c.l.s4 1983009808
        %v1229 = vunpack.c.0.s8 %v1228
        %v1230 = vlaneseq
        %v1231 = vshrl.u32 %v1230, 7
        %v1232 = vsub.s32 %v1229, %v1231
        %v1233 = vrot.slane %v1148, %v1232
        %v1236 = vunpack.c.l.s4 1983009808
        %v1237 = vunpack.c.0.s8 %v1236
        %v1238 = vlaneseq
        %v1239 = vshrl.u32 %v1238, 7
        %v1240 = vsub.s32 %v1237, %v1239
        %v1241 = vrot.slane %v1154, %v1240
        %v1242 = vcombine.low %v1233, %v1241
        %v1243 = vcombine.high %v1233, %v1241
        %v1245 = vunpack.c.l.s4 1934713408
        %v1246 = vunpack.c.0.s8 %v1245
        %v1247 = vlaneseq
        %v1248 = vshrl.u32 %v1247, 7
        %v1249 = vsub.s32 %v1246, %v1248
        %v1250 = vrot.slane %v1242, %v1249
        %v1252 = vunpack.c.l.s4 1934713408
        %v1253 = vunpack.c.0.s8 %v1252
        %v1254 = vlaneseq
        %v1255 = vshrl.u32 %v1254, 7
        %v1256 = vsub.s32 %v1253, %v1255
        %v1257 = vrot.slane %v1243, %v1256
        %v1258 = vcombine.high %v1250, 0
        %v1259 = vcombine.high %v1257, 0
        %v1262 = vunpack.c.l.s4 1983009808
        %v1263 = vunpack.c.0.s8 %v1262
        %v1264 = vlaneseq
        %v1265 = vshrl.u32 %v1264, 7
        %v1266 = vsub.s32 %v1263, %v1265
        %v1267 = vrot.slane %v1151, %v1266
        %v1270 = vunpack.c.l.s4 1983009808
        %v1271 = vunpack.c.0.s8 %v1270
        %v1272 = vlaneseq
        %v1273 = vshrl.u32 %v1272, 7
        %v1274 = vsub.s32 %v1271, %v1273
        %v1275 = vrot.slane %v1157, %v1274
        %v1276 = vcombine.low %v1267, %v1275
        %v1277 = vcombine.high %v1267, %v1275
        %v1279 = vunpack.c.l.s4 1934713408
        %v1280 = vunpack.c.0.s8 %v1279
        %v1281 = vlaneseq
        %v1282 = vshrl.u32 %v1281, 7
        %v1283 = vsub.s32 %v1280, %v1282
        %v1284 = vrot.slane %v1276, %v1283
        %v1286 = vunpack.c.l.s4 1934713408
        %v1287 = vunpack.c.0.s8 %v1286
        %v1288 = vlaneseq
        %v1289 = vshrl.u32 %v1288, 7
        %v1290 = vsub.s32 %v1287, %v1289
        %v1291 = vrot.slane %v1277, %v1290
        %v1292 = vcombine.high %v1284, 0
        %v1293 = vcombine.high %v1291, 0
        %v1295 = vunpack.c.l.b16 %v1216
        %v1296 = vpack.c.b16 %v1295, %v1295
        %1297 = vrot.lane.b32.xlu0 %v1296, 16
        %v1298 = vpop.permute.xlu0 %1297
        %v1300 = vunpack.c.l.b16 %v1190
        %v1301 = vpack.c.b16 %v1300, %v1300
        %1302 = vrot.lane.b32.xlu0 %v1301, 32
        %v1303 = vpop.permute.xlu0 %1302
        %v1305 = vunpack.c.l.b16 %v1224
        %v1306 = vpack.c.b16 %v1305, %v1305
        %1307 = vrot.lane.b32.xlu0 %v1306, 48
        %v1308 = vpop.permute.xlu0 %1307
        %v1310 = vunpack.c.l.b16 %v1189
        %v1311 = vpack.c.b16 %v1310, %v1310
        %1312 = vrot.lane.b32.xlu0 %v1311, 64
        %v1313 = vpop.permute.xlu0 %1312
        %v1315 = vunpack.c.l.b16 %v1223
        %v1316 = vpack.c.b16 %v1315, %v1315
        %1317 = vrot.lane.b32.xlu0 %v1316, 80
        %v1318 = vpop.permute.xlu0 %1317
        %v1320 = vunpack.c.l.b16 %v1191
        %v1321 = vpack.c.b16 %v1320, %v1320
        %1322 = vrot.lane.b32.xlu0 %v1321, 96
        %v1323 = vpop.permute.xlu0 %1322
        %v1325 = vunpack.c.l.b16 %v1225
        %v1326 = vpack.c.b16 %v1325, %v1325
        %1327 = vrot.lane.b32.xlu0 %v1326, 112
        %v1328 = vpop.permute.xlu0 %1327
        %v1330 = vunpack.c.l.b16 %v1284
        %v1331 = vpack.c.b16 %v1330, %v1330
        %1332 = vrot.lane.b32.xlu0 %v1331, 16
        %v1333 = vpop.permute.xlu0 %1332
        %v1335 = vunpack.c.l.b16 %v1258
        %v1336 = vpack.c.b16 %v1335, %v1335
        %1337 = vrot.lane.b32.xlu0 %v1336, 32
        %v1338 = vpop.permute.xlu0 %1337
        %v1340 = vunpack.c.l.b16 %v1292
        %v1341 = vpack.c.b16 %v1340, %v1340
        %1342 = vrot.lane.b32.xlu0 %v1341, 48
        %v1343 = vpop.permute.xlu0 %1342
        %v1345 = vunpack.c.l.b16 %v1257
        %v1346 = vpack.c.b16 %v1345, %v1345
        %1347 = vrot.lane.b32.xlu0 %v1346, 64
        %v1348 = vpop.permute.xlu0 %1347
        %v1350 = vunpack.c.l.b16 %v1291
        %v1351 = vpack.c.b16 %v1350, %v1350
        %1352 = vrot.lane.b32.xlu0 %v1351, 80
        %v1353 = vpop.permute.xlu0 %1352
        %v1355 = vunpack.c.l.b16 %v1259
        %v1356 = vpack.c.b16 %v1355, %v1355
        %1357 = vrot.lane.b32.xlu0 %v1356, 96
        %v1358 = vpop.permute.xlu0 %1357
        %v1360 = vunpack.c.l.b16 %v1293
        %v1361 = vpack.c.b16 %v1360, %v1360
        %1362 = vrot.lane.b32.xlu0 %v1361, 112
        %v1363 = vpop.permute.xlu0 %1362
        %v1366 = vsel %vm432, %v1182, %v1298
        %v1368 = vsel %vm436, %v1366, %v1303
        %v1370 = vsel %vm439, %v1368, %v1308
        %v1372 = vsel %vm442, %v1370, %v1313
        %v1374 = vsel %vm445, %v1372, %v1318
        %v1376 = vsel %vm448, %v1374, %v1323
        %v1378 = vsel %vm451, %v1376, %v1328
        %v1381 = vsel %vm432, %v1250, %v1333
        %v1383 = vsel %vm436, %v1381, %v1338
        %v1385 = vsel %vm439, %v1383, %v1343
        %v1387 = vsel %vm442, %v1385, %v1348
        %v1389 = vsel %vm445, %v1387, %v1353
        %v1391 = vsel %vm448, %v1389, %v1358
        %v1393 = vsel %vm451, %v1391, %v1363
        %v1396 = vunpack.c.l.b16 %v1378
        %v1397 = vunpack.c.l.b16 %v1393
        %v1398 = vpack.c.b16 %v1397, %v1396
        %v1399 = vrot.slane %v1398, 6
        %1401 = vst [vmem:[#allocation2 + $0x8] sm:$0xcc] %v1399
        %1402 = vrot.lane.b32.xlu0 %v1064, 127
        %v1403 = vpop.permute.xlu0 %1402
        %1404 = vrot.lane.b32.xlu0 %v1073, 127
        %v1405 = vpop.permute.xlu0 %1404
        %1406 = vrot.lane.b32.xlu0 %v1084, 127
        %v1407 = vpop.permute.xlu0 %1406
        %1408 = vrot.lane.b32.xlu0 %v1093, 127
        %v1409 = vpop.permute.xlu0 %1408
        %1410 = vrot.lane.b32.xlu0 %v1104, 127
        %v1411 = vpop.permute.xlu0 %1410
        %1412 = vrot.lane.b32.xlu0 %v1113, 127
        %v1413 = vpop.permute.xlu0 %1412
        %1414 = vrot.lane.b32.xlu0 %v1124, 127
        %v1415 = vpop.permute.xlu0 %1414
        %1416 = vrot.lane.b32.xlu0 %v1133, 127
        %v1417 = vpop.permute.xlu0 %1416
        %v1420 = vpack.i.b16 %v1407, %v1403
        %v1421 = vshrl.u32 %v1403, 16
        %v1422 = vshrl.u32 %v1407, 16
        %v1423 = vpack.i.b16 %v1422, %v1421
        %v1426 = vpack.i.b16 %v1415, %v1411
        %v1427 = vshrl.u32 %v1411, 16
        %v1428 = vshrl.u32 %v1415, 16
        %v1429 = vpack.i.b16 %v1428, %v1427
        %v1432 = vpack.i.b16 %v1409, %v1405
        %v1433 = vshrl.u32 %v1405, 16
        %v1434 = vshrl.u32 %v1409, 16
        %v1435 = vpack.i.b16 %v1434, %v1433
        %v1438 = vpack.i.b16 %v1417, %v1413
        %v1439 = vshrl.u32 %v1413, 16
        %v1440 = vshrl.u32 %v1417, 16
        %v1441 = vpack.i.b16 %v1440, %v1439
        %v1444 = vunpack.c.l.s4 1983009808
        %v1445 = vunpack.c.0.s8 %v1444
        %v1446 = vlaneseq
        %v1447 = vshrl.u32 %v1446, 7
        %v1448 = vsub.s32 %v1445, %v1447
        %v1449 = vrot.slane %v1420, %v1448
        %v1452 = vunpack.c.l.s4 1983009808
        %v1453 = vunpack.c.0.s8 %v1452
        %v1454 = vlaneseq
        %v1455 = vshrl.u32 %v1454, 7
        %v1456 = vsub.s32 %v1453, %v1455
        %v1457 = vrot.slane %v1426, %v1456
        %v1458 = vcombine.low %v1449, %v1457
        %v1459 = vcombine.high %v1449, %v1457
        %v1461 = vunpack.c.l.s4 1934713408
        %v1462 = vunpack.c.0.s8 %v1461
        %v1463 = vlaneseq
        %v1464 = vshrl.u32 %v1463, 7
        %v1465 = vsub.s32 %v1462, %v1464
        %v1466 = vrot.slane %v1458, %v1465
        %v1468 = vunpack.c.l.s4 1934713408
        %v1469 = vunpack.c.0.s8 %v1468
        %v1470 = vlaneseq
        %v1471 = vshrl.u32 %v1470, 7
        %v1472 = vsub.s32 %v1469, %v1471
        %v1473 = vrot.slane %v1459, %v1472
        %v1474 = vcombine.high %v1466, 0
        %v1475 = vcombine.high %v1473, 0
        %v1478 = vunpack.c.l.s4 1983009808
        %v1479 = vunpack.c.0.s8 %v1478
        %v1480 = vlaneseq
        %v1481 = vshrl.u32 %v1480, 7
        %v1482 = vsub.s32 %v1479, %v1481
        %v1483 = vrot.slane %v1423, %v1482
        %v1486 = vunpack.c.l.s4 1983009808
        %v1487 = vunpack.c.0.s8 %v1486
        %v1488 = vlaneseq
        %v1489 = vshrl.u32 %v1488, 7
        %v1490 = vsub.s32 %v1487, %v1489
        %v1491 = vrot.slane %v1429, %v1490
        %v1492 = vcombine.low %v1483, %v1491
        %v1493 = vcombine.high %v1483, %v1491
        %v1495 = vunpack.c.l.s4 1934713408
        %v1496 = vunpack.c.0.s8 %v1495
        %v1497 = vlaneseq
        %v1498 = vshrl.u32 %v1497, 7
        %v1499 = vsub.s32 %v1496, %v1498
        %v1500 = vrot.slane %v1492, %v1499
        %v1502 = vunpack.c.l.s4 1934713408
        %v1503 = vunpack.c.0.s8 %v1502
        %v1504 = vlaneseq
        %v1505 = vshrl.u32 %v1504, 7
        %v1506 = vsub.s32 %v1503, %v1505
        %v1507 = vrot.slane %v1493, %v1506
        %v1508 = vcombine.high %v1500, 0
        %v1509 = vcombine.high %v1507, 0
        %v1512 = vunpack.c.l.s4 1983009808
        %v1513 = vunpack.c.0.s8 %v1512
        %v1514 = vlaneseq
        %v1515 = vshrl.u32 %v1514, 7
        %v1516 = vsub.s32 %v1513, %v1515
        %v1517 = vrot.slane %v1432, %v1516
        %v1520 = vunpack.c.l.s4 1983009808
        %v1521 = vunpack.c.0.s8 %v1520
        %v1522 = vlaneseq
        %v1523 = vshrl.u32 %v1522, 7
        %v1524 = vsub.s32 %v1521, %v1523
        %v1525 = vrot.slane %v1438, %v1524
        %v1526 = vcombine.low %v1517, %v1525
        %v1527 = vcombine.high %v1517, %v1525
        %v1529 = vunpack.c.l.s4 1934713408
        %v1530 = vunpack.c.0.s8 %v1529
        %v1531 = vlaneseq
        %v1532 = vshrl.u32 %v1531, 7
        %v1533 = vsub.s32 %v1530, %v1532
        %v1534 = vrot.slane %v1526, %v1533
        %v1536 = vunpack.c.l.s4 1934713408
        %v1537 = vunpack.c.0.s8 %v1536
        %v1538 = vlaneseq
        %v1539 = vshrl.u32 %v1538, 7
        %v1540 = vsub.s32 %v1537, %v1539
        %v1541 = vrot.slane %v1527, %v1540
        %v1542 = vcombine.high %v1534, 0
        %v1543 = vcombine.high %v1541, 0
        %v1546 = vunpack.c.l.s4 1983009808
        %v1547 = vunpack.c.0.s8 %v1546
        %v1548 = vlaneseq
        %v1549 = vshrl.u32 %v1548, 7
        %v1550 = vsub.s32 %v1547, %v1549
        %v1551 = vrot.slane %v1435, %v1550
        %v1554 = vunpack.c.l.s4 1983009808
        %v1555 = vunpack.c.0.s8 %v1554
        %v1556 = vlaneseq
        %v1557 = vshrl.u32 %v1556, 7
        %v1558 = vsub.s32 %v1555, %v1557
        %v1559 = vrot.slane %v1441, %v1558
        %v1560 = vcombine.low %v1551, %v1559
        %v1561 = vcombine.high %v1551, %v1559
        %v1563 = vunpack.c.l.s4 1934713408
        %v1564 = vunpack.c.0.s8 %v1563
        %v1565 = vlaneseq
        %v1566 = vshrl.u32 %v1565, 7
        %v1567 = vsub.s32 %v1564, %v1566
        %v1568 = vrot.slane %v1560, %v1567
        %v1570 = vunpack.c.l.s4 1934713408
        %v1571 = vunpack.c.0.s8 %v1570
        %v1572 = vlaneseq
        %v1573 = vshrl.u32 %v1572, 7
        %v1574 = vsub.s32 %v1571, %v1573
        %v1575 = vrot.slane %v1561, %v1574
        %v1576 = vcombine.high %v1568, 0
        %v1577 = vcombine.high %v1575, 0
        %v1579 = vunpack.c.l.b16 %v1500
        %v1580 = vpack.c.b16 %v1579, %v1579
        %1581 = vrot.lane.b32.xlu0 %v1580, 16
        %v1582 = vpop.permute.xlu0 %1581
        %v1584 = vunpack.c.l.b16 %v1474
        %v1585 = vpack.c.b16 %v1584, %v1584
        %1586 = vrot.lane.b32.xlu0 %v1585, 32
        %v1587 = vpop.permute.xlu0 %1586
        %v1589 = vunpack.c.l.b16 %v1508
        %v1590 = vpack.c.b16 %v1589, %v1589
        %1591 = vrot.lane.b32.xlu0 %v1590, 48
        %v1592 = vpop.permute.xlu0 %1591
        %v1594 = vunpack.c.l.b16 %v1473
        %v1595 = vpack.c.b16 %v1594, %v1594
        %1596 = vrot.lane.b32.xlu0 %v1595, 64
        %v1597 = vpop.permute.xlu0 %1596
        %v1599 = vunpack.c.l.b16 %v1507
        %v1600 = vpack.c.b16 %v1599, %v1599
        %1601 = vrot.lane.b32.xlu0 %v1600, 80
        %v1602 = vpop.permute.xlu0 %1601
        %v1604 = vunpack.c.l.b16 %v1475
        %v1605 = vpack.c.b16 %v1604, %v1604
        %1606 = vrot.lane.b32.xlu0 %v1605, 96
        %v1607 = vpop.permute.xlu0 %1606
        %v1609 = vunpack.c.l.b16 %v1509
        %v1610 = vpack.c.b16 %v1609, %v1609
        %1611 = vrot.lane.b32.xlu0 %v1610, 112
        %v1612 = vpop.permute.xlu0 %1611
        %v1614 = vunpack.c.l.b16 %v1568
        %v1615 = vpack.c.b16 %v1614, %v1614
        %1616 = vrot.lane.b32.xlu0 %v1615, 16
        %v1617 = vpop.permute.xlu0 %1616
        %v1619 = vunpack.c.l.b16 %v1542
        %v1620 = vpack.c.b16 %v1619, %v1619
        %1621 = vrot.lane.b32.xlu0 %v1620, 32
        %v1622 = vpop.permute.xlu0 %1621
        %v1624 = vunpack.c.l.b16 %v1576
        %v1625 = vpack.c.b16 %v1624, %v1624
        %1626 = vrot.lane.b32.xlu0 %v1625, 48
        %v1627 = vpop.permute.xlu0 %1626
        %v1629 = vunpack.c.l.b16 %v1541
        %v1630 = vpack.c.b16 %v1629, %v1629
        %1631 = vrot.lane.b32.xlu0 %v1630, 64
        %v1632 = vpop.permute.xlu0 %1631
        %v1634 = vunpack.c.l.b16 %v1575
        %v1635 = vpack.c.b16 %v1634, %v1634
        %1636 = vrot.lane.b32.xlu0 %v1635, 80
        %v1637 = vpop.permute.xlu0 %1636
        %v1639 = vunpack.c.l.b16 %v1543
        %v1640 = vpack.c.b16 %v1639, %v1639
        %1641 = vrot.lane.b32.xlu0 %v1640, 96
        %v1642 = vpop.permute.xlu0 %1641
        %v1644 = vunpack.c.l.b16 %v1577
        %v1645 = vpack.c.b16 %v1644, %v1644
        %1646 = vrot.lane.b32.xlu0 %v1645, 112
        %v1647 = vpop.permute.xlu0 %1646
        %v1650 = vsel %vm432, %v1466, %v1582
        %v1652 = vsel %vm436, %v1650, %v1587
        %v1654 = vsel %vm439, %v1652, %v1592
        %v1656 = vsel %vm442, %v1654, %v1597
        %v1658 = vsel %vm445, %v1656, %v1602
        %v1660 = vsel %vm448, %v1658, %v1607
        %v1662 = vsel %vm451, %v1660, %v1612
        %v1665 = vsel %vm432, %v1534, %v1617
        %v1667 = vsel %vm436, %v1665, %v1622
        %v1669 = vsel %vm439, %v1667, %v1627
        %v1671 = vsel %vm442, %v1669, %v1632
        %v1673 = vsel %vm445, %v1671, %v1637
        %v1675 = vsel %vm448, %v1673, %v1642
        %v1677 = vsel %vm451, %v1675, %v1647
        %v1680 = vunpack.c.l.b16 %v1662
        %v1681 = vunpack.c.l.b16 %v1677
        %v1682 = vpack.c.b16 %v1681, %v1680
        %1684 = vst [vmem:[#allocation2 + $0x10] sm:$0x33] %v1682
        %1685 = vrot.lane.b32.xlu0 %v1064, 126
        %v1686 = vpop.permute.xlu0 %1685
        %1687 = vrot.lane.b32.xlu0 %v1073, 126
        %v1688 = vpop.permute.xlu0 %1687
        %1689 = vrot.lane.b32.xlu0 %v1084, 126
        %v1690 = vpop.permute.xlu0 %1689
        %1691 = vrot.lane.b32.xlu0 %v1093, 126
        %v1692 = vpop.permute.xlu0 %1691
        %1693 = vrot.lane.b32.xlu0 %v1104, 126
        %v1694 = vpop.permute.xlu0 %1693
        %1695 = vrot.lane.b32.xlu0 %v1113, 126
        %v1696 = vpop.permute.xlu0 %1695
        %1697 = vrot.lane.b32.xlu0 %v1124, 126
        %v1698 = vpop.permute.xlu0 %1697
        %1699 = vrot.lane.b32.xlu0 %v1133, 126
        %v1700 = vpop.permute.xlu0 %1699
        %v1703 = vpack.i.b16 %v1690, %v1686
        %v1704 = vshrl.u32 %v1686, 16
        %v1705 = vshrl.u32 %v1690, 16
        %v1706 = vpack.i.b16 %v1705, %v1704
        %v1709 = vpack.i.b16 %v1698, %v1694
        %v1710 = vshrl.u32 %v1694, 16
        %v1711 = vshrl.u32 %v1698, 16
        %v1712 = vpack.i.b16 %v1711, %v1710
        %v1715 = vpack.i.b16 %v1692, %v1688
        %v1716 = vshrl.u32 %v1688, 16
        %v1717 = vshrl.u32 %v1692, 16
        %v1718 = vpack.i.b16 %v1717, %v1716
        %v1721 = vpack.i.b16 %v1700, %v1696
        %v1722 = vshrl.u32 %v1696, 16
        %v1723 = vshrl.u32 %v1700, 16
        %v1724 = vpack.i.b16 %v1723, %v1722
        %v1727 = vunpack.c.l.s4 1983009808
        %v1728 = vunpack.c.0.s8 %v1727
        %v1729 = vlaneseq
        %v1730 = vshrl.u32 %v1729, 7
        %v1731 = vsub.s32 %v1728, %v1730
        %v1732 = vrot.slane %v1703, %v1731
        %v1735 = vunpack.c.l.s4 1983009808
        %v1736 = vunpack.c.0.s8 %v1735
        %v1737 = vlaneseq
        %v1738 = vshrl.u32 %v1737, 7
        %v1739 = vsub.s32 %v1736, %v1738
        %v1740 = vrot.slane %v1709, %v1739
        %v1741 = vcombine.low %v1732, %v1740
        %v1742 = vcombine.high %v1732, %v1740
        %v1744 = vunpack.c.l.s4 1934713408
        %v1745 = vunpack.c.0.s8 %v1744
        %v1746 = vlaneseq
        %v1747 = vshrl.u32 %v1746, 7
        %v1748 = vsub.s32 %v1745, %v1747
        %v1749 = vrot.slane %v1741, %v1748
        %v1751 = vunpack.c.l.s4 1934713408
        %v1752 = vunpack.c.0.s8 %v1751
        %v1753 = vlaneseq
        %v1754 = vshrl.u32 %v1753, 7
        %v1755 = vsub.s32 %v1752, %v1754
        %v1756 = vrot.slane %v1742, %v1755
        %v1757 = vcombine.high %v1749, 0
        %v1758 = vcombine.high %v1756, 0
        %v1761 = vunpack.c.l.s4 1983009808
        %v1762 = vunpack.c.0.s8 %v1761
        %v1763 = vlaneseq
        %v1764 = vshrl.u32 %v1763, 7
        %v1765 = vsub.s32 %v1762, %v1764
        %v1766 = vrot.slane %v1706, %v1765
        %v1769 = vunpack.c.l.s4 1983009808
        %v1770 = vunpack.c.0.s8 %v1769
        %v1771 = vlaneseq
        %v1772 = vshrl.u32 %v1771, 7
        %v1773 = vsub.s32 %v1770, %v1772
        %v1774 = vrot.slane %v1712, %v1773
        %v1775 = vcombine.low %v1766, %v1774
        %v1776 = vcombine.high %v1766, %v1774
        %v1778 = vunpack.c.l.s4 1934713408
        %v1779 = vunpack.c.0.s8 %v1778
        %v1780 = vlaneseq
        %v1781 = vshrl.u32 %v1780, 7
        %v1782 = vsub.s32 %v1779, %v1781
        %v1783 = vrot.slane %v1775, %v1782
        %v1785 = vunpack.c.l.s4 1934713408
        %v1786 = vunpack.c.0.s8 %v1785
        %v1787 = vlaneseq
        %v1788 = vshrl.u32 %v1787, 7
        %v1789 = vsub.s32 %v1786, %v1788
        %v1790 = vrot.slane %v1776, %v1789
        %v1791 = vcombine.high %v1783, 0
        %v1792 = vcombine.high %v1790, 0
        %v1795 = vunpack.c.l.s4 1983009808
        %v1796 = vunpack.c.0.s8 %v1795
        %v1797 = vlaneseq
        %v1798 = vshrl.u32 %v1797, 7
        %v1799 = vsub.s32 %v1796, %v1798
        %v1800 = vrot.slane %v1715, %v1799
        %v1803 = vunpack.c.l.s4 1983009808
        %v1804 = vunpack.c.0.s8 %v1803
        %v1805 = vlaneseq
        %v1806 = vshrl.u32 %v1805, 7
        %v1807 = vsub.s32 %v1804, %v1806
        %v1808 = vrot.slane %v1721, %v1807
        %v1809 = vcombine.low %v1800, %v1808
        %v1810 = vcombine.high %v1800, %v1808
        %v1812 = vunpack.c.l.s4 1934713408
        %v1813 = vunpack.c.0.s8 %v1812
        %v1814 = vlaneseq
        %v1815 = vshrl.u32 %v1814, 7
        %v1816 = vsub.s32 %v1813, %v1815
        %v1817 = vrot.slane %v1809, %v1816
        %v1819 = vunpack.c.l.s4 1934713408
        %v1820 = vunpack.c.0.s8 %v1819
        %v1821 = vlaneseq
        %v1822 = vshrl.u32 %v1821, 7
        %v1823 = vsub.s32 %v1820, %v1822
        %v1824 = vrot.slane %v1810, %v1823
        %v1825 = vcombine.high %v1817, 0
        %v1826 = vcombine.high %v1824, 0
        %v1829 = vunpack.c.l.s4 1983009808
        %v1830 = vunpack.c.0.s8 %v1829
        %v1831 = vlaneseq
        %v1832 = vshrl.u32 %v1831, 7
        %v1833 = vsub.s32 %v1830, %v1832
        %v1834 = vrot.slane %v1718, %v1833
        %v1837 = vunpack.c.l.s4 1983009808
        %v1838 = vunpack.c.0.s8 %v1837
        %v1839 = vlaneseq
        %v1840 = vshrl.u32 %v1839, 7
        %v1841 = vsub.s32 %v1838, %v1840
        %v1842 = vrot.slane %v1724, %v1841
        %v1843 = vcombine.low %v1834, %v1842
        %v1844 = vcombine.high %v1834, %v1842
        %v1846 = vunpack.c.l.s4 1934713408
        %v1847 = vunpack.c.0.s8 %v1846
        %v1848 = vlaneseq
        %v1849 = vshrl.u32 %v1848, 7
        %v1850 = vsub.s32 %v1847, %v1849
        %v1851 = vrot.slane %v1843, %v1850
        %v1853 = vunpack.c.l.s4 1934713408
        %v1854 = vunpack.c.0.s8 %v1853
        %v1855 = vlaneseq
        %v1856 = vshrl.u32 %v1855, 7
        %v1857 = vsub.s32 %v1854, %v1856
        %v1858 = vrot.slane %v1844, %v1857
        %v1859 = vcombine.high %v1851, 0
        %v1860 = vcombine.high %v1858, 0
        %v1862 = vunpack.c.l.b16 %v1783
        %v1863 = vpack.c.b16 %v1862, %v1862
        %1864 = vrot.lane.b32.xlu0 %v1863, 16
        %v1865 = vpop.permute.xlu0 %1864
        %v1867 = vunpack.c.l.b16 %v1757
        %v1868 = vpack.c.b16 %v1867, %v1867
        %1869 = vrot.lane.b32.xlu0 %v1868, 32
        %v1870 = vpop.permute.xlu0 %1869
        %v1872 = vunpack.c.l.b16 %v1791
        %v1873 = vpack.c.b16 %v1872, %v1872
        %1874 = vrot.lane.b32.xlu0 %v1873, 48
        %v1875 = vpop.permute.xlu0 %1874
        %v1877 = vunpack.c.l.b16 %v1756
        %v1878 = vpack.c.b16 %v1877, %v1877
        %1879 = vrot.lane.b32.xlu0 %v1878, 64
        %v1880 = vpop.permute.xlu0 %1879
        %v1882 = vunpack.c.l.b16 %v1790
        %v1883 = vpack.c.b16 %v1882, %v1882
        %1884 = vrot.lane.b32.xlu0 %v1883, 80
        %v1885 = vpop.permute.xlu0 %1884
        %v1887 = vunpack.c.l.b16 %v1758
        %v1888 = vpack.c.b16 %v1887, %v1887
        %1889 = vrot.lane.b32.xlu0 %v1888, 96
        %v1890 = vpop.permute.xlu0 %1889
        %v1892 = vunpack.c.l.b16 %v1792
        %v1893 = vpack.c.b16 %v1892, %v1892
        %1894 = vrot.lane.b32.xlu0 %v1893, 112
        %v1895 = vpop.permute.xlu0 %1894
        %v1897 = vunpack.c.l.b16 %v1851
        %v1898 = vpack.c.b16 %v1897, %v1897
        %1899 = vrot.lane.b32.xlu0 %v1898, 16
        %v1900 = vpop.permute.xlu0 %1899
        %v1902 = vunpack.c.l.b16 %v1825
        %v1903 = vpack.c.b16 %v1902, %v1902
        %1904 = vrot.lane.b32.xlu0 %v1903, 32
        %v1905 = vpop.permute.xlu0 %1904
        %v1907 = vunpack.c.l.b16 %v1859
        %v1908 = vpack.c.b16 %v1907, %v1907
        %1909 = vrot.lane.b32.xlu0 %v1908, 48
        %v1910 = vpop.permute.xlu0 %1909
        %v1912 = vunpack.c.l.b16 %v1824
        %v1913 = vpack.c.b16 %v1912, %v1912
        %1914 = vrot.lane.b32.xlu0 %v1913, 64
        %v1915 = vpop.permute.xlu0 %1914
        %v1917 = vunpack.c.l.b16 %v1858
        %v1918 = vpack.c.b16 %v1917, %v1917
        %1919 = vrot.lane.b32.xlu0 %v1918, 80
        %v1920 = vpop.permute.xlu0 %1919
        %v1922 = vunpack.c.l.b16 %v1826
        %v1923 = vpack.c.b16 %v1922, %v1922
        %1924 = vrot.lane.b32.xlu0 %v1923, 96
        %v1925 = vpop.permute.xlu0 %1924
        %v1927 = vunpack.c.l.b16 %v1860
        %v1928 = vpack.c.b16 %v1927, %v1927
        %1929 = vrot.lane.b32.xlu0 %v1928, 112
        %v1930 = vpop.permute.xlu0 %1929
        %v1933 = vsel %vm432, %v1749, %v1865
        %v1935 = vsel %vm436, %v1933, %v1870
        %v1937 = vsel %vm439, %v1935, %v1875
        %v1939 = vsel %vm442, %v1937, %v1880
        %v1941 = vsel %vm445, %v1939, %v1885
        %v1943 = vsel %vm448, %v1941, %v1890
        %v1945 = vsel %vm451, %v1943, %v1895
        %v1948 = vsel %vm432, %v1817, %v1900
        %v1950 = vsel %vm436, %v1948, %v1905
        %v1952 = vsel %vm439, %v1950, %v1910
        %v1954 = vsel %vm442, %v1952, %v1915
        %v1956 = vsel %vm445, %v1954, %v1920
        %v1958 = vsel %vm448, %v1956, %v1925
        %v1960 = vsel %vm451, %v1958, %v1930
        %v1963 = vunpack.c.l.b16 %v1945
        %v1964 = vunpack.c.l.b16 %v1960
        %v1965 = vpack.c.b16 %v1964, %v1963
        %v1966 = vrot.slane %v1965, 6
        %1968 = vst [vmem:[#allocation2 + $0x10] sm:$0xcc] %v1966
        %vm1973 = vcmask 1042432
        %vm1974 = vcmask 1046532
        %vm1975 = vmor %vm1973, %vm1974
        %v1976 = vrot.slane %v190, 5
        %v1977 = vrot.slane %v1976, 4
        %v1978 = vrot.slane %v191, 5
        %v1979 = vsel %vm1975, %v1977, %v1978
        %v1980 = vrot.slane %v1978, 4
        %v1981 = vrot.slane %v192, 5
        %v1982 = vsel %vm1975, %v1980, %v1981
        %v1983 = vrot.slane %v193, 5
        %v1984 = vrot.slane %v1983, 4
        %v1985 = vrot.slane %v194, 5
        %v1986 = vsel %vm1975, %v1984, %v1985
        %v1987 = vrot.slane %v1985, 4
        %v1988 = vrot.slane %v195, 5
        %v1989 = vsel %vm1975, %v1987, %v1988
        %v1990 = vrot.slane %v196, 5
        %v1991 = vrot.slane %v1990, 4
        %v1992 = vrot.slane %v197, 5
        %v1993 = vsel %vm1975, %v1991, %v1992
        %v1994 = vrot.slane %v1992, 4
        %v1995 = vrot.slane %v198, 5
        %v1996 = vsel %vm1975, %v1994, %v1995
        %v1997 = vrot.slane %v199, 5
        %v1998 = vrot.slane %v1997, 4
        %v1999 = vrot.slane %v200, 5
        %v2000 = vsel %vm1975, %v1998, %v1999
        %v2001 = vrot.slane %v1999, 4
        %v2002 = vrot.slane %v201, 5
        %v2003 = vsel %vm1975, %v2001, %v2002
        %v2006 = vpack.i.b16 %v1986, %v1979
        %v2007 = vshrl.u32 %v1979, 16
        %v2008 = vshrl.u32 %v1986, 16
        %v2009 = vpack.i.b16 %v2008, %v2007
        %v2012 = vpack.i.b16 %v2000, %v1993
        %v2013 = vshrl.u32 %v1993, 16
        %v2014 = vshrl.u32 %v2000, 16
        %v2015 = vpack.i.b16 %v2014, %v2013
        %v2018 = vpack.i.b16 %v1989, %v1982
        %v2019 = vshrl.u32 %v1982, 16
        %v2020 = vshrl.u32 %v1989, 16
        %v2021 = vpack.i.b16 %v2020, %v2019
        %v2024 = vpack.i.b16 %v2003, %v1996
        %v2025 = vshrl.u32 %v1996, 16
        %v2026 = vshrl.u32 %v2003, 16
        %v2027 = vpack.i.b16 %v2026, %v2025
        %v2030 = vunpack.c.l.s4 1983009808
        %v2031 = vunpack.c.0.s8 %v2030
        %v2032 = vlaneseq
        %v2033 = vshrl.u32 %v2032, 7
        %v2034 = vsub.s32 %v2031, %v2033
        %v2035 = vrot.slane %v2006, %v2034
        %v2038 = vunpack.c.l.s4 1983009808
        %v2039 = vunpack.c.0.s8 %v2038
        %v2040 = vlaneseq
        %v2041 = vshrl.u32 %v2040, 7
        %v2042 = vsub.s32 %v2039, %v2041
        %v2043 = vrot.slane %v2012, %v2042
        %v2044 = vcombine.low %v2035, %v2043
        %v2045 = vcombine.high %v2035, %v2043
        %v2047 = vunpack.c.l.s4 1934713408
        %v2048 = vunpack.c.0.s8 %v2047
        %v2049 = vlaneseq
        %v2050 = vshrl.u32 %v2049, 7
        %v2051 = vsub.s32 %v2048, %v2050
        %v2052 = vrot.slane %v2044, %v2051
        %v2054 = vunpack.c.l.s4 1934713408
        %v2055 = vunpack.c.0.s8 %v2054
        %v2056 = vlaneseq
        %v2057 = vshrl.u32 %v2056, 7
        %v2058 = vsub.s32 %v2055, %v2057
        %v2059 = vrot.slane %v2045, %v2058
        %v2060 = vcombine.high %v2052, 0
        %v2061 = vcombine.high %v2059, 0
        %v2064 = vunpack.c.l.s4 1983009808
        %v2065 = vunpack.c.0.s8 %v2064
        %v2066 = vlaneseq
        %v2067 = vshrl.u32 %v2066, 7
        %v2068 = vsub.s32 %v2065, %v2067
        %v2069 = vrot.slane %v2009, %v2068
        %v2072 = vunpack.c.l.s4 1983009808
        %v2073 = vunpack.c.0.s8 %v2072
        %v2074 = vlaneseq
        %v2075 = vshrl.u32 %v2074, 7
        %v2076 = vsub.s32 %v2073, %v2075
        %v2077 = vrot.slane %v2015, %v2076
        %v2078 = vcombine.low %v2069, %v2077
        %v2079 = vcombine.high %v2069, %v2077
        %v2081 = vunpack.c.l.s4 1934713408
        %v2082 = vunpack.c.0.s8 %v2081
        %v2083 = vlaneseq
        %v2084 = vshrl.u32 %v2083, 7
        %v2085 = vsub.s32 %v2082, %v2084
        %v2086 = vrot.slane %v2078, %v2085
        %v2088 = vunpack.c.l.s4 1934713408
        %v2089 = vunpack.c.0.s8 %v2088
        %v2090 = vlaneseq
        %v2091 = vshrl.u32 %v2090, 7
        %v2092 = vsub.s32 %v2089, %v2091
        %v2093 = vrot.slane %v2079, %v2092
        %v2094 = vcombine.high %v2086, 0
        %v2095 = vcombine.high %v2093, 0
        %v2098 = vunpack.c.l.s4 1983009808
        %v2099 = vunpack.c.0.s8 %v2098
        %v2100 = vlaneseq
        %v2101 = vshrl.u32 %v2100, 7
        %v2102 = vsub.s32 %v2099, %v2101
        %v2103 = vrot.slane %v2018, %v2102
        %v2106 = vunpack.c.l.s4 1983009808
        %v2107 = vunpack.c.0.s8 %v2106
        %v2108 = vlaneseq
        %v2109 = vshrl.u32 %v2108, 7
        %v2110 = vsub.s32 %v2107, %v2109
        %v2111 = vrot.slane %v2024, %v2110
        %v2112 = vcombine.low %v2103, %v2111
        %v2113 = vcombine.high %v2103, %v2111
        %v2115 = vunpack.c.l.s4 1934713408
        %v2116 = vunpack.c.0.s8 %v2115
        %v2117 = vlaneseq
        %v2118 = vshrl.u32 %v2117, 7
        %v2119 = vsub.s32 %v2116, %v2118
        %v2120 = vrot.slane %v2112, %v2119
        %v2122 = vunpack.c.l.s4 1934713408
        %v2123 = vunpack.c.0.s8 %v2122
        %v2124 = vlaneseq
        %v2125 = vshrl.u32 %v2124, 7
        %v2126 = vsub.s32 %v2123, %v2125
        %v2127 = vrot.slane %v2113, %v2126
        %v2128 = vcombine.high %v2120, 0
        %v2129 = vcombine.high %v2127, 0
        %v2132 = vunpack.c.l.s4 1983009808
        %v2133 = vunpack.c.0.s8 %v2132
        %v2134 = vlaneseq
        %v2135 = vshrl.u32 %v2134, 7
        %v2136 = vsub.s32 %v2133, %v2135
        %v2137 = vrot.slane %v2021, %v2136
        %v2140 = vunpack.c.l.s4 1983009808
        %v2141 = vunpack.c.0.s8 %v2140
        %v2142 = vlaneseq
        %v2143 = vshrl.u32 %v2142, 7
        %v2144 = vsub.s32 %v2141, %v2143
        %v2145 = vrot.slane %v2027, %v2144
        %v2146 = vcombine.low %v2137, %v2145
        %v2147 = vcombine.high %v2137, %v2145
        %v2149 = vunpack.c.l.s4 1934713408
        %v2150 = vunpack.c.0.s8 %v2149
        %v2151 = vlaneseq
        %v2152 = vshrl.u32 %v2151, 7
        %v2153 = vsub.s32 %v2150, %v2152
        %v2154 = vrot.slane %v2146, %v2153
        %v2156 = vunpack.c.l.s4 1934713408
        %v2157 = vunpack.c.0.s8 %v2156
        %v2158 = vlaneseq
        %v2159 = vshrl.u32 %v2158, 7
        %v2160 = vsub.s32 %v2157, %v2159
        %v2161 = vrot.slane %v2147, %v2160
        %v2162 = vcombine.high %v2154, 0
        %v2163 = vcombine.high %v2161, 0
        %v2165 = vunpack.c.l.b16 %v2086
        %v2166 = vpack.c.b16 %v2165, %v2165
        %2167 = vrot.lane.b32.xlu0 %v2166, 16
        %v2168 = vpop.permute.xlu0 %2167
        %v2170 = vunpack.c.l.b16 %v2060
        %v2171 = vpack.c.b16 %v2170, %v2170
        %2172 = vrot.lane.b32.xlu0 %v2171, 32
        %v2173 = vpop.permute.xlu0 %2172
        %v2175 = vunpack.c.l.b16 %v2094
        %v2176 = vpack.c.b16 %v2175, %v2175
        %2177 = vrot.lane.b32.xlu0 %v2176, 48
        %v2178 = vpop.permute.xlu0 %2177
        %v2180 = vunpack.c.l.b16 %v2059
        %v2181 = vpack.c.b16 %v2180, %v2180
        %2182 = vrot.lane.b32.xlu0 %v2181, 64
        %v2183 = vpop.permute.xlu0 %2182
        %v2185 = vunpack.c.l.b16 %v2093
        %v2186 = vpack.c.b16 %v2185, %v2185
        %2187 = vrot.lane.b32.xlu0 %v2186, 80
        %v2188 = vpop.permute.xlu0 %2187
        %v2190 = vunpack.c.l.b16 %v2061
        %v2191 = vpack.c.b16 %v2190, %v2190
        %2192 = vrot.lane.b32.xlu0 %v2191, 96
        %v2193 = vpop.permute.xlu0 %2192
        %v2195 = vunpack.c.l.b16 %v2095
        %v2196 = vpack.c.b16 %v2195, %v2195
        %2197 = vrot.lane.b32.xlu0 %v2196, 112
        %v2198 = vpop.permute.xlu0 %2197
        %v2200 = vunpack.c.l.b16 %v2154
        %v2201 = vpack.c.b16 %v2200, %v2200
        %2202 = vrot.lane.b32.xlu0 %v2201, 16
        %v2203 = vpop.permute.xlu0 %2202
        %v2205 = vunpack.c.l.b16 %v2128
        %v2206 = vpack.c.b16 %v2205, %v2205
        %2207 = vrot.lane.b32.xlu0 %v2206, 32
        %v2208 = vpop.permute.xlu0 %2207
        %v2210 = vunpack.c.l.b16 %v2162
        %v2211 = vpack.c.b16 %v2210, %v2210
        %2212 = vrot.lane.b32.xlu0 %v2211, 48
        %v2213 = vpop.permute.xlu0 %2212
        %v2215 = vunpack.c.l.b16 %v2127
        %v2216 = vpack.c.b16 %v2215, %v2215
        %2217 = vrot.lane.b32.xlu0 %v2216, 64
        %v2218 = vpop.permute.xlu0 %2217
        %v2220 = vunpack.c.l.b16 %v2161
        %v2221 = vpack.c.b16 %v2220, %v2220
        %2222 = vrot.lane.b32.xlu0 %v2221, 80
        %v2223 = vpop.permute.xlu0 %2222
        %v2225 = vunpack.c.l.b16 %v2129
        %v2226 = vpack.c.b16 %v2225, %v2225
        %2227 = vrot.lane.b32.xlu0 %v2226, 96
        %v2228 = vpop.permute.xlu0 %2227
        %v2230 = vunpack.c.l.b16 %v2163
        %v2231 = vpack.c.b16 %v2230, %v2230
        %2232 = vrot.lane.b32.xlu0 %v2231, 112
        %v2233 = vpop.permute.xlu0 %2232
        %v2236 = vsel %vm432, %v2052, %v2168
        %v2238 = vsel %vm436, %v2236, %v2173
        %v2240 = vsel %vm439, %v2238, %v2178
        %v2242 = vsel %vm442, %v2240, %v2183
        %v2244 = vsel %vm445, %v2242, %v2188
        %v2246 = vsel %vm448, %v2244, %v2193
        %v2248 = vsel %vm451, %v2246, %v2198
        %v2251 = vsel %vm432, %v2120, %v2203
        %v2253 = vsel %vm436, %v2251, %v2208
        %v2255 = vsel %vm439, %v2253, %v2213
        %v2257 = vsel %vm442, %v2255, %v2218
        %v2259 = vsel %vm445, %v2257, %v2223
        %v2261 = vsel %vm448, %v2259, %v2228
        %v2263 = vsel %vm451, %v2261, %v2233
        %v2266 = vunpack.c.l.b16 %v2248
        %v2267 = vunpack.c.l.b16 %v2263
        %v2268 = vpack.c.b16 %v2267, %v2266
        %2270 = vst [vmem:[#allocation2 + $0x18] sm:$0x33] %v2268
        %2271 = vrot.lane.b32.xlu0 %v1979, 127
        %v2272 = vpop.permute.xlu0 %2271
        %2273 = vrot.lane.b32.xlu0 %v1982, 127
        %v2274 = vpop.permute.xlu0 %2273
        %2275 = vrot.lane.b32.xlu0 %v1986, 127
        %v2276 = vpop.permute.xlu0 %2275
        %2277 = vrot.lane.b32.xlu0 %v1989, 127
        %v2278 = vpop.permute.xlu0 %2277
        %2279 = vrot.lane.b32.xlu0 %v1993, 127
        %v2280 = vpop.permute.xlu0 %2279
        %2281 = vrot.lane.b32.xlu0 %v1996, 127
        %v2282 = vpop.permute.xlu0 %2281
        %2283 = vrot.lane.b32.xlu0 %v2000, 127
        %v2284 = vpop.permute.xlu0 %2283
        %2285 = vrot.lane.b32.xlu0 %v2003, 127
        %v2286 = vpop.permute.xlu0 %2285
        %v2289 = vpack.i.b16 %v2276, %v2272
        %v2290 = vshrl.u32 %v2272, 16
        %v2291 = vshrl.u32 %v2276, 16
        %v2292 = vpack.i.b16 %v2291, %v2290
        %v2295 = vpack.i.b16 %v2284, %v2280
        %v2296 = vshrl.u32 %v2280, 16
        %v2297 = vshrl.u32 %v2284, 16
        %v2298 = vpack.i.b16 %v2297, %v2296
        %v2301 = vpack.i.b16 %v2278, %v2274
        %v2302 = vshrl.u32 %v2274, 16
        %v2303 = vshrl.u32 %v2278, 16
        %v2304 = vpack.i.b16 %v2303, %v2302
        %v2307 = vpack.i.b16 %v2286, %v2282
        %v2308 = vshrl.u32 %v2282, 16
        %v2309 = vshrl.u32 %v2286, 16
        %v2310 = vpack.i.b16 %v2309, %v2308
        %v2313 = vunpack.c.l.s4 1983009808
        %v2314 = vunpack.c.0.s8 %v2313
        %v2315 = vlaneseq
        %v2316 = vshrl.u32 %v2315, 7
        %v2317 = vsub.s32 %v2314, %v2316
        %v2318 = vrot.slane %v2289, %v2317
        %v2321 = vunpack.c.l.s4 1983009808
        %v2322 = vunpack.c.0.s8 %v2321
        %v2323 = vlaneseq
        %v2324 = vshrl.u32 %v2323, 7
        %v2325 = vsub.s32 %v2322, %v2324
        %v2326 = vrot.slane %v2295, %v2325
        %v2327 = vcombine.low %v2318, %v2326
        %v2328 = vcombine.high %v2318, %v2326
        %v2330 = vunpack.c.l.s4 1934713408
        %v2331 = vunpack.c.0.s8 %v2330
        %v2332 = vlaneseq
        %v2333 = vshrl.u32 %v2332, 7
        %v2334 = vsub.s32 %v2331, %v2333
        %v2335 = vrot.slane %v2327, %v2334
        %v2337 = vunpack.c.l.s4 1934713408
        %v2338 = vunpack.c.0.s8 %v2337
        %v2339 = vlaneseq
        %v2340 = vshrl.u32 %v2339, 7
        %v2341 = vsub.s32 %v2338, %v2340
        %v2342 = vrot.slane %v2328, %v2341
        %v2343 = vcombine.high %v2335, 0
        %v2344 = vcombine.high %v2342, 0
        %v2347 = vunpack.c.l.s4 1983009808
        %v2348 = vunpack.c.0.s8 %v2347
        %v2349 = vlaneseq
        %v2350 = vshrl.u32 %v2349, 7
        %v2351 = vsub.s32 %v2348, %v2350
        %v2352 = vrot.slane %v2292, %v2351
        %v2355 = vunpack.c.l.s4 1983009808
        %v2356 = vunpack.c.0.s8 %v2355
        %v2357 = vlaneseq
        %v2358 = vshrl.u32 %v2357, 7
        %v2359 = vsub.s32 %v2356, %v2358
        %v2360 = vrot.slane %v2298, %v2359
        %v2361 = vcombine.low %v2352, %v2360
        %v2362 = vcombine.high %v2352, %v2360
        %v2364 = vunpack.c.l.s4 1934713408
        %v2365 = vunpack.c.0.s8 %v2364
        %v2366 = vlaneseq
        %v2367 = vshrl.u32 %v2366, 7
        %v2368 = vsub.s32 %v2365, %v2367
        %v2369 = vrot.slane %v2361, %v2368
        %v2371 = vunpack.c.l.s4 1934713408
        %v2372 = vunpack.c.0.s8 %v2371
        %v2373 = vlaneseq
        %v2374 = vshrl.u32 %v2373, 7
        %v2375 = vsub.s32 %v2372, %v2374
        %v2376 = vrot.slane %v2362, %v2375
        %v2377 = vcombine.high %v2369, 0
        %v2378 = vcombine.high %v2376, 0
        %v2381 = vunpack.c.l.s4 1983009808
        %v2382 = vunpack.c.0.s8 %v2381
        %v2383 = vlaneseq
        %v2384 = vshrl.u32 %v2383, 7
        %v2385 = vsub.s32 %v2382, %v2384
        %v2386 = vrot.slane %v2301, %v2385
        %v2389 = vunpack.c.l.s4 1983009808
        %v2390 = vunpack.c.0.s8 %v2389
        %v2391 = vlaneseq
        %v2392 = vshrl.u32 %v2391, 7
        %v2393 = vsub.s32 %v2390, %v2392
        %v2394 = vrot.slane %v2307, %v2393
        %v2395 = vcombine.low %v2386, %v2394
        %v2396 = vcombine.high %v2386, %v2394
        %v2398 = vunpack.c.l.s4 1934713408
        %v2399 = vunpack.c.0.s8 %v2398
        %v2400 = vlaneseq
        %v2401 = vshrl.u32 %v2400, 7
        %v2402 = vsub.s32 %v2399, %v2401
        %v2403 = vrot.slane %v2395, %v2402
        %v2405 = vunpack.c.l.s4 1934713408
        %v2406 = vunpack.c.0.s8 %v2405
        %v2407 = vlaneseq
        %v2408 = vshrl.u32 %v2407, 7
        %v2409 = vsub.s32 %v2406, %v2408
        %v2410 = vrot.slane %v2396, %v2409
        %v2411 = vcombine.high %v2403, 0
        %v2412 = vcombine.high %v2410, 0
        %v2415 = vunpack.c.l.s4 1983009808
        %v2416 = vunpack.c.0.s8 %v2415
        %v2417 = vlaneseq
        %v2418 = vshrl.u32 %v2417, 7
        %v2419 = vsub.s32 %v2416, %v2418
        %v2420 = vrot.slane %v2304, %v2419
        %v2423 = vunpack.c.l.s4 1983009808
        %v2424 = vunpack.c.0.s8 %v2423
        %v2425 = vlaneseq
        %v2426 = vshrl.u32 %v2425, 7
        %v2427 = vsub.s32 %v2424, %v2426
        %v2428 = vrot.slane %v2310, %v2427
        %v2429 = vcombine.low %v2420, %v2428
        %v2430 = vcombine.high %v2420, %v2428
        %v2432 = vunpack.c.l.s4 1934713408
        %v2433 = vunpack.c.0.s8 %v2432
        %v2434 = vlaneseq
        %v2435 = vshrl.u32 %v2434, 7
        %v2436 = vsub.s32 %v2433, %v2435
        %v2437 = vrot.slane %v2429, %v2436
        %v2439 = vunpack.c.l.s4 1934713408
        %v2440 = vunpack.c.0.s8 %v2439
        %v2441 = vlaneseq
        %v2442 = vshrl.u32 %v2441, 7
        %v2443 = vsub.s32 %v2440, %v2442
        %v2444 = vrot.slane %v2430, %v2443
        %v2445 = vcombine.high %v2437, 0
        %v2446 = vcombine.high %v2444, 0
        %v2448 = vunpack.c.l.b16 %v2369
        %v2449 = vpack.c.b16 %v2448, %v2448
        %2450 = vrot.lane.b32.xlu0 %v2449, 16
        %v2451 = vpop.permute.xlu0 %2450
        %v2453 = vunpack.c.l.b16 %v2343
        %v2454 = vpack.c.b16 %v2453, %v2453
        %2455 = vrot.lane.b32.xlu0 %v2454, 32
        %v2456 = vpop.permute.xlu0 %2455
        %v2458 = vunpack.c.l.b16 %v2377
        %v2459 = vpack.c.b16 %v2458, %v2458
        %2460 = vrot.lane.b32.xlu0 %v2459, 48
        %v2461 = vpop.permute.xlu0 %2460
        %v2463 = vunpack.c.l.b16 %v2342
        %v2464 = vpack.c.b16 %v2463, %v2463
        %2465 = vrot.lane.b32.xlu0 %v2464, 64
        %v2466 = vpop.permute.xlu0 %2465
        %v2468 = vunpack.c.l.b16 %v2376
        %v2469 = vpack.c.b16 %v2468, %v2468
        %2470 = vrot.lane.b32.xlu0 %v2469, 80
        %v2471 = vpop.permute.xlu0 %2470
        %v2473 = vunpack.c.l.b16 %v2344
        %v2474 = vpack.c.b16 %v2473, %v2473
        %2475 = vrot.lane.b32.xlu0 %v2474, 96
        %v2476 = vpop.permute.xlu0 %2475
        %v2478 = vunpack.c.l.b16 %v2378
        %v2479 = vpack.c.b16 %v2478, %v2478
        %2480 = vrot.lane.b32.xlu0 %v2479, 112
        %v2481 = vpop.permute.xlu0 %2480
        %v2483 = vunpack.c.l.b16 %v2437
        %v2484 = vpack.c.b16 %v2483, %v2483
        %2485 = vrot.lane.b32.xlu0 %v2484, 16
        %v2486 = vpop.permute.xlu0 %2485
        %v2488 = vunpack.c.l.b16 %v2411
        %v2489 = vpack.c.b16 %v2488, %v2488
        %2490 = vrot.lane.b32.xlu0 %v2489, 32
        %v2491 = vpop.permute.xlu0 %2490
        %v2493 = vunpack.c.l.b16 %v2445
        %v2494 = vpack.c.b16 %v2493, %v2493
        %2495 = vrot.lane.b32.xlu0 %v2494, 48
        %v2496 = vpop.permute.xlu0 %2495
        %v2498 = vunpack.c.l.b16 %v2410
        %v2499 = vpack.c.b16 %v2498, %v2498
        %2500 = vrot.lane.b32.xlu0 %v2499, 64
        %v2501 = vpop.permute.xlu0 %2500
        %v2503 = vunpack.c.l.b16 %v2444
        %v2504 = vpack.c.b16 %v2503, %v2503
        %2505 = vrot.lane.b32.xlu0 %v2504, 80
        %v2506 = vpop.permute.xlu0 %2505
        %v2508 = vunpack.c.l.b16 %v2412
        %v2509 = vpack.c.b16 %v2508, %v2508
        %2510 = vrot.lane.b32.xlu0 %v2509, 96
        %v2511 = vpop.permute.xlu0 %2510
        %v2513 = vunpack.c.l.b16 %v2446
        %v2514 = vpack.c.b16 %v2513, %v2513
        %2515 = vrot.lane.b32.xlu0 %v2514, 112
        %v2516 = vpop.permute.xlu0 %2515
        %v2519 = vsel %vm432, %v2335, %v2451
        %v2521 = vsel %vm436, %v2519, %v2456
        %v2523 = vsel %vm439, %v2521, %v2461
        %v2525 = vsel %vm442, %v2523, %v2466
        %v2527 = vsel %vm445, %v2525, %v2471
        %v2529 = vsel %vm448, %v2527, %v2476
        %v2531 = vsel %vm451, %v2529, %v2481
        %v2534 = vsel %vm432, %v2403, %v2486
        %v2536 = vsel %vm436, %v2534, %v2491
        %v2538 = vsel %vm439, %v2536, %v2496
        %v2540 = vsel %vm442, %v2538, %v2501
        %v2542 = vsel %vm445, %v2540, %v2506
        %v2544 = vsel %vm448, %v2542, %v2511
        %v2546 = vsel %vm451, %v2544, %v2516
        %v2549 = vunpack.c.l.b16 %v2531
        %v2550 = vunpack.c.l.b16 %v2546
        %v2551 = vpack.c.b16 %v2550, %v2549
        %v2552 = vrot.slane %v2551, 6
        %2554 = vst [vmem:[#allocation2 + $0x18] sm:$0xcc] %v2552
        %2555 = vrot.lane.b32.xlu0 %v1979, 126
        %v2556 = vpop.permute.xlu0 %2555
        %2557 = vrot.lane.b32.xlu0 %v1982, 126
        %v2558 = vpop.permute.xlu0 %2557
        %2559 = vrot.lane.b32.xlu0 %v1986, 126
        %v2560 = vpop.permute.xlu0 %2559
        %2561 = vrot.lane.b32.xlu0 %v1989, 126
        %v2562 = vpop.permute.xlu0 %2561
        %2563 = vrot.lane.b32.xlu0 %v1993, 126
        %v2564 = vpop.permute.xlu0 %2563
        %2565 = vrot.lane.b32.xlu0 %v1996, 126
        %v2566 = vpop.permute.xlu0 %2565
        %2567 = vrot.lane.b32.xlu0 %v2000, 126
        %v2568 = vpop.permute.xlu0 %2567
        %2569 = vrot.lane.b32.xlu0 %v2003, 126
        %v2570 = vpop.permute.xlu0 %2569
        %v2573 = vpack.i.b16 %v2560, %v2556
        %v2574 = vshrl.u32 %v2556, 16
        %v2575 = vshrl.u32 %v2560, 16
        %v2576 = vpack.i.b16 %v2575, %v2574
        %v2579 = vpack.i.b16 %v2568, %v2564
        %v2580 = vshrl.u32 %v2564, 16
        %v2581 = vshrl.u32 %v2568, 16
        %v2582 = vpack.i.b16 %v2581, %v2580
        %v2585 = vpack.i.b16 %v2562, %v2558
        %v2586 = vshrl.u32 %v2558, 16
        %v2587 = vshrl.u32 %v2562, 16
        %v2588 = vpack.i.b16 %v2587, %v2586
        %v2591 = vpack.i.b16 %v2570, %v2566
        %v2592 = vshrl.u32 %v2566, 16
        %v2593 = vshrl.u32 %v2570, 16
        %v2594 = vpack.i.b16 %v2593, %v2592
        %v2597 = vunpack.c.l.s4 1983009808
        %v2598 = vunpack.c.0.s8 %v2597
        %v2599 = vlaneseq
        %v2600 = vshrl.u32 %v2599, 7
        %v2601 = vsub.s32 %v2598, %v2600
        %v2602 = vrot.slane %v2573, %v2601
        %v2605 = vunpack.c.l.s4 1983009808
        %v2606 = vunpack.c.0.s8 %v2605
        %v2607 = vlaneseq
        %v2608 = vshrl.u32 %v2607, 7
        %v2609 = vsub.s32 %v2606, %v2608
        %v2610 = vrot.slane %v2579, %v2609
        %v2611 = vcombine.low %v2602, %v2610
        %v2612 = vcombine.high %v2602, %v2610
        %v2614 = vunpack.c.l.s4 1934713408
        %v2615 = vunpack.c.0.s8 %v2614
        %v2616 = vlaneseq
        %v2617 = vshrl.u32 %v2616, 7
        %v2618 = vsub.s32 %v2615, %v2617
        %v2619 = vrot.slane %v2611, %v2618
        %v2621 = vunpack.c.l.s4 1934713408
        %v2622 = vunpack.c.0.s8 %v2621
        %v2623 = vlaneseq
        %v2624 = vshrl.u32 %v2623, 7
        %v2625 = vsub.s32 %v2622, %v2624
        %v2626 = vrot.slane %v2612, %v2625
        %v2627 = vcombine.high %v2619, 0
        %v2628 = vcombine.high %v2626, 0
        %v2631 = vunpack.c.l.s4 1983009808
        %v2632 = vunpack.c.0.s8 %v2631
        %v2633 = vlaneseq
        %v2634 = vshrl.u32 %v2633, 7
        %v2635 = vsub.s32 %v2632, %v2634
        %v2636 = vrot.slane %v2576, %v2635
        %v2639 = vunpack.c.l.s4 1983009808
        %v2640 = vunpack.c.0.s8 %v2639
        %v2641 = vlaneseq
        %v2642 = vshrl.u32 %v2641, 7
        %v2643 = vsub.s32 %v2640, %v2642
        %v2644 = vrot.slane %v2582, %v2643
        %v2645 = vcombine.low %v2636, %v2644
        %v2646 = vcombine.high %v2636, %v2644
        %v2648 = vunpack.c.l.s4 1934713408
        %v2649 = vunpack.c.0.s8 %v2648
        %v2650 = vlaneseq
        %v2651 = vshrl.u32 %v2650, 7
        %v2652 = vsub.s32 %v2649, %v2651
        %v2653 = vrot.slane %v2645, %v2652
        %v2655 = vunpack.c.l.s4 1934713408
        %v2656 = vunpack.c.0.s8 %v2655
        %v2657 = vlaneseq
        %v2658 = vshrl.u32 %v2657, 7
        %v2659 = vsub.s32 %v2656, %v2658
        %v2660 = vrot.slane %v2646, %v2659
        %v2661 = vcombine.high %v2653, 0
        %v2662 = vcombine.high %v2660, 0
        %v2665 = vunpack.c.l.s4 1983009808
        %v2666 = vunpack.c.0.s8 %v2665
        %v2667 = vlaneseq
        %v2668 = vshrl.u32 %v2667, 7
        %v2669 = vsub.s32 %v2666, %v2668
        %v2670 = vrot.slane %v2585, %v2669
        %v2673 = vunpack.c.l.s4 1983009808
        %v2674 = vunpack.c.0.s8 %v2673
        %v2675 = vlaneseq
        %v2676 = vshrl.u32 %v2675, 7
        %v2677 = vsub.s32 %v2674, %v2676
        %v2678 = vrot.slane %v2591, %v2677
        %v2679 = vcombine.low %v2670, %v2678
        %v2680 = vcombine.high %v2670, %v2678
        %v2682 = vunpack.c.l.s4 1934713408
        %v2683 = vunpack.c.0.s8 %v2682
        %v2684 = vlaneseq
        %v2685 = vshrl.u32 %v2684, 7
        %v2686 = vsub.s32 %v2683, %v2685
        %v2687 = vrot.slane %v2679, %v2686
        %v2689 = vunpack.c.l.s4 1934713408
        %v2690 = vunpack.c.0.s8 %v2689
        %v2691 = vlaneseq
        %v2692 = vshrl.u32 %v2691, 7
        %v2693 = vsub.s32 %v2690, %v2692
        %v2694 = vrot.slane %v2680, %v2693
        %v2695 = vcombine.high %v2687, 0
        %v2696 = vcombine.high %v2694, 0
        %v2699 = vunpack.c.l.s4 1983009808
        %v2700 = vunpack.c.0.s8 %v2699
        %v2701 = vlaneseq
        %v2702 = vshrl.u32 %v2701, 7
        %v2703 = vsub.s32 %v2700, %v2702
        %v2704 = vrot.slane %v2588, %v2703
        %v2707 = vunpack.c.l.s4 1983009808
        %v2708 = vunpack.c.0.s8 %v2707
        %v2709 = vlaneseq
        %v2710 = vshrl.u32 %v2709, 7
        %v2711 = vsub.s32 %v2708, %v2710
        %v2712 = vrot.slane %v2594, %v2711
        %v2713 = vcombine.low %v2704, %v2712
        %v2714 = vcombine.high %v2704, %v2712
        %v2716 = vunpack.c.l.s4 1934713408
        %v2717 = vunpack.c.0.s8 %v2716
        %v2718 = vlaneseq
        %v2719 = vshrl.u32 %v2718, 7
        %v2720 = vsub.s32 %v2717, %v2719
        %v2721 = vrot.slane %v2713, %v2720
        %v2723 = vunpack.c.l.s4 1934713408
        %v2724 = vunpack.c.0.s8 %v2723
        %v2725 = vlaneseq
        %v2726 = vshrl.u32 %v2725, 7
        %v2727 = vsub.s32 %v2724, %v2726
        %v2728 = vrot.slane %v2714, %v2727
        %v2729 = vcombine.high %v2721, 0
        %v2730 = vcombine.high %v2728, 0
        %v2732 = vunpack.c.l.b16 %v2653
        %v2733 = vpack.c.b16 %v2732, %v2732
        %2734 = vrot.lane.b32.xlu0 %v2733, 16
        %v2735 = vpop.permute.xlu0 %2734
        %v2737 = vunpack.c.l.b16 %v2627
        %v2738 = vpack.c.b16 %v2737, %v2737
        %2739 = vrot.lane.b32.xlu0 %v2738, 32
        %v2740 = vpop.permute.xlu0 %2739
        %v2742 = vunpack.c.l.b16 %v2661
        %v2743 = vpack.c.b16 %v2742, %v2742
        %2744 = vrot.lane.b32.xlu0 %v2743, 48
        %v2745 = vpop.permute.xlu0 %2744
        %v2747 = vunpack.c.l.b16 %v2626
        %v2748 = vpack.c.b16 %v2747, %v2747
        %2749 = vrot.lane.b32.xlu0 %v2748, 64
        %v2750 = vpop.permute.xlu0 %2749
        %v2752 = vunpack.c.l.b16 %v2660
        %v2753 = vpack.c.b16 %v2752, %v2752
        %2754 = vrot.lane.b32.xlu0 %v2753, 80
        %v2755 = vpop.permute.xlu0 %2754
        %v2757 = vunpack.c.l.b16 %v2628
        %v2758 = vpack.c.b16 %v2757, %v2757
        %2759 = vrot.lane.b32.xlu0 %v2758, 96
        %v2760 = vpop.permute.xlu0 %2759
        %v2762 = vunpack.c.l.b16 %v2662
        %v2763 = vpack.c.b16 %v2762, %v2762
        %2764 = vrot.lane.b32.xlu0 %v2763, 112
        %v2765 = vpop.permute.xlu0 %2764
        %v2767 = vunpack.c.l.b16 %v2721
        %v2768 = vpack.c.b16 %v2767, %v2767
        %2769 = vrot.lane.b32.xlu0 %v2768, 16
        %v2770 = vpop.permute.xlu0 %2769
        %v2772 = vunpack.c.l.b16 %v2695
        %v2773 = vpack.c.b16 %v2772, %v2772
        %2774 = vrot.lane.b32.xlu0 %v2773, 32
        %v2775 = vpop.permute.xlu0 %2774
        %v2777 = vunpack.c.l.b16 %v2729
        %v2778 = vpack.c.b16 %v2777, %v2777
        %2779 = vrot.lane.b32.xlu0 %v2778, 48
        %v2780 = vpop.permute.xlu0 %2779
        %v2782 = vunpack.c.l.b16 %v2694
        %v2783 = vpack.c.b16 %v2782, %v2782
        %2784 = vrot.lane.b32.xlu0 %v2783, 64
        %v2785 = vpop.permute.xlu0 %2784
        %v2787 = vunpack.c.l.b16 %v2728
        %v2788 = vpack.c.b16 %v2787, %v2787
        %2789 = vrot.lane.b32.xlu0 %v2788, 80
        %v2790 = vpop.permute.xlu0 %2789
        %v2792 = vunpack.c.l.b16 %v2696
        %v2793 = vpack.c.b16 %v2792, %v2792
        %2794 = vrot.lane.b32.xlu0 %v2793, 96
        %v2795 = vpop.permute.xlu0 %2794
        %v2797 = vunpack.c.l.b16 %v2730
        %v2798 = vpack.c.b16 %v2797, %v2797
        %2799 = vrot.lane.b32.xlu0 %v2798, 112
        %v2800 = vpop.permute.xlu0 %2799
        %v2803 = vsel %vm432, %v2619, %v2735
        %v2805 = vsel %vm436, %v2803, %v2740
        %v2807 = vsel %vm439, %v2805, %v2745
        %v2809 = vsel %vm442, %v2807, %v2750
        %v2811 = vsel %vm445, %v2809, %v2755
        %v2813 = vsel %vm448, %v2811, %v2760
        %v2815 = vsel %vm451, %v2813, %v2765
        %v2818 = vsel %vm432, %v2687, %v2770
        %v2820 = vsel %vm436, %v2818, %v2775
        %v2822 = vsel %vm439, %v2820, %v2780
        %v2824 = vsel %vm442, %v2822, %v2785
        %v2826 = vsel %vm445, %v2824, %v2790
        %v2828 = vsel %vm448, %v2826, %v2795
        %v2830 = vsel %vm451, %v2828, %v2800
        %v2833 = vunpack.c.l.b16 %v2815
        %v2834 = vunpack.c.l.b16 %v2830
        %v2835 = vpack.c.b16 %v2834, %v2833
        %2837 = vst [vmem:[#allocation2 + $0x20] sm:$0x33] %v2835
        %v2838 = vld [vmem:[%s1] sm:$0xf]
        %v2839 = vld [vmem:[#allocation2] sm:$0xff]
        %v2840 = vld [vmem:[#allocation2 + $0x8] sm:$0xff]
        %v2841 = vld [vmem:[#allocation2 + $0x10] sm:$0xff]
        %v2842 = vld [vmem:[#allocation2 + $0x18] sm:$0xff]
        %v2843 = vld [vmem:[#allocation2 + $0x20] sm:$0x33]
        %v2844 = vld [vmem:[%s2] sm:$0xff]
        %2846 = vset.pattern.permute.xlu0 0
        %2847 = vperm.xlu0 %2846, %v2844
        %v2848 = vpop.permute.xlu0 %2847
        %v2855 = vunpack.c.l.b16 %v2839
        %v2856 = vunpack.c.h.b16 %v2839
        %v2857 = vunpack.c.l.b16 %v2840
        %v2858 = vunpack.c.h.b16 %v2840
        %v2859 = vunpack.c.l.b16 %v2841
        %v2860 = vunpack.c.h.b16 %v2841
        %v2861 = vunpack.c.l.b16 %v2842
        %v2862 = vunpack.c.h.b16 %v2842
        %v2863 = vunpack.c.l.b16 %v2843
        %v2864 = vunpack.c.h.b16 %v2843
        %v2865 = vpack.c.b16 %v2857, %v2855
        %v2866 = vpack.c.b16 %v2858, %v2856
        %v2867 = vpack.c.b16 %v2861, %v2859
        %v2868 = vpack.c.b16 %v2862, %v2860
        %v2869 = vpack.c.b16 %v2863, %v2863
        %v2870 = vpack.c.b16 %v2864, %v2864
        %vm2875 = vcmask 293888
        %v2877 = vsel %vm2875, %v2838, 0
        %vm2879 = vcmask 1041408
        %v2881 = vsel %vm2879, %v2869, 0
        %v2884 = vsel %vm2879, %v2870, 0
        %2886 = vmatprep.subr.bf16.mxu0 0
        %2887 = vmatpush1.bf16.msra.mxu0 0
        %2888 = vmatprep.subr.bf16.mxu0 0
        %2889 = vmatpush1.bf16.msra.mxu0 0
        %2890 = vmatprep.subr.bf16.mxu0 0
        %2891 = vmatpush1.bf16.msra.mxu0 0
        %2892 = vmatprep.subr.bf16.mxu0 0
        %2893 = vmatpush1.bf16.msra.mxu0 0
        %2894 = vmatprep.subr.bf16.mxu0 0
        %2895 = vmatpush1.bf16.msra.mxu0 0
        %2896 = vmatprep.subr.bf16.mxu0 %v2884
        %2897 = vmatpush1.bf16.msra.mxu0 %v2881
        %2898 = vmatprep.subr.bf16.mxu0 %v2868
        %2899 = vmatpush1.bf16.msra.mxu0 %v2867
        %2900 = vmatprep.subr.bf16.mxu0 %v2866
        %2901 = vmatpush1.bf16.msra.mxu0 %v2865
        %2902 = vmatprep.subr.bf16.mxu0 0
        %2903 = vmatpush2.bf16.msra.mxu0 0
        %2904 = vmatprep.subr.bf16.mxu0 0
        %2905 = vmatpush2.bf16.msra.mxu0 0
        %2906 = vmatprep.subr.bf16.mxu0 0
        %2907 = vmatpush2.bf16.msra.mxu0 0
        %2908 = vmatprep.subr.bf16.mxu0 0
        %2909 = vmatpush2.bf16.msra.mxu0 0
        %2910 = vmatprep.subr.bf16.mxu0 0
        %2911 = vmatpush2.bf16.msra.mxu0 0
        %2912 = vmatprep.subr.bf16.mxu0 0
        %2913 = vmatpush2.bf16.msra.mxu0 0
        %2914 = vmatprep.subr.bf16.mxu0 0
        %2915 = vmatpush2.bf16.msra.mxu0 0
        %2916 = vmatprep.subr.bf16.mxu0 0
        %2917 = vmatpush2.bf16.msra.mxu0 0
        %2918 = vmatprep.mubr.bf16.mxu0 0
        %2919 = vmatmul.mubr.bf16.gmra.mxu0 %v2877
        %v2920 = vpop.f32.mrf.mxu0
        %v2921 = vadd.f32 %v2848, %v2920
        %v2922 = vpop.f32.mrf.mxu0
        %v2923 = vadd.f32 %v2848, %v2922
        %v2924 = vpop.f32.mrf.mxu0
        %v2925 = vpop.f32.mrf.mxu0
        %2926 = vdwg.mxu0
        %v2927 = vmax.f32 %v2921, 0.0
        %v2928 = vmax.f32 %v2923, 0.0
        %v2929 = vpack.c.bf16 %v2927, %v2927
        %v2930 = vpack.c.bf16 %v2928, %v2928
        %v2933 = vunpack.c.l.b16 %v2929
        %v2934 = vunpack.c.l.b16 %v2930
        %v2935 = vpack.c.b16 %v2934, %v2933
        %2937 = vst [vmem:[%s177] sm:$0xff] %v2935
        %s2938 = sand.u32 %s107, 1
        %s2939 = scalar_lea.sflag [#allocation4], %s2938
        %s2940 = sand.u32 %s107, 1
        %s2941 = smul.addr %s2940, 8
        %s2942 = scalar_lea.vmem [#allocation3], %s2941
        // Predicated region
        $region33: #{tpu_custom_call.1} parent=31 // pred_check
          %p2943 = pneg %p117
        $region34: #{tpu_custom_call.1} parent=31 // pred_check_branch
          %2945 = sbr.rel (%p2943) target = $region36
        $region35: #{tpu_custom_call.1} parent=31 // pred_region
          %s2946 = smul.u32 2, %s22
          %s2948 = ssub.s32 128, 128
          %2949 = vsyncadd %s2939, %s2948
          %s2950 = smul.addr %s21, 2
          %s2951 = sadd.s32 %s2946, %s2950
          %s2952 = smul.addr %s2951, 64
          %s2953 = scalar_lea.hbm %s3, %s2952
          %s2955 = sshll.u32 %s2942, 4
          %s2956 = int_to_ptr.vmem [resolvable:$true] %s2955
          %2958 = dma.vmem_to_hbm [thread:$0]  %s2956, 128, %s2953, %s2939
        $region36: #{tpu_custom_call.1} parent=31 // pred_fallthru
          _
      $region32: #{tpu_custom_call.1} parent=5 // pred_fallthru
        _
      %p2959 = scmp.le.s32.totalorder 2, %s12
      // Predicated region
      $region37: #{tpu_custom_call.1} parent=5 // pred_check
        %p2960 = pneg %p2959
      $region38: #{tpu_custom_call.1} parent=5 // pred_check_branch
        %2962 = sbr.rel (%p2960) target = $region40
      $region39: #{tpu_custom_call.1} parent=5 // pred_region
        %s2963 = ssub.s32 %s12, 2
        // Predicated region
        $region41: #{tpu_custom_call.1} parent=39 // pred_check
          %p2964 = pneg %p123
        $region42: #{tpu_custom_call.1} parent=39 // pred_check_branch
          %2966 = sbr.rel (%p2964) target = $region44
        $region43: #{tpu_custom_call.1} parent=39 // pred_region
          %s2967 = sand.u32 %s108, 1
          %s2968 = scalar_lea.sflag [#allocation4], %s2967
          %s2969 = sand.u32 %s108, 1
          %s2970 = smul.addr %s2969, 8
          %s2971 = scalar_lea.vmem [#allocation3], %s2970
          %2972 = dma.done %s2968, 128
        $region44: #{tpu_custom_call.1} parent=39 // pred_fallthru
          _
      $region40: #{tpu_custom_call.1} parent=5 // pred_fallthru
        _
    $region6: #{tpu_custom_call.1} parent=1 // loop_footer
      %s16 = sadd.s32 1, %s12
    $region7: #{tpu_custom_call.1} parent=1 // loop_footer_branch
      %11 = sbr.rel target = $region3
    $region8: #{tpu_custom_call.1} parent=1 // loop_exit
      _
    %2973 = vsyncpa [#allocation4], 1
    %s2974 = scalar_lea.sflag [#allocation4], 1
    %2975 = vsyncpa %s2974, 1

</llo_original>
